<compile_context>
chip_gen: v6e
topology: v6e:2x2x1
jax: 0.10.0
libtpu: 0.0.40
codegen_flags: <defaults>
</compile_context>

<pallas_src>
import jax
import jax.numpy as jnp
from jax.experimental import pallas as pl
from jax.experimental.pallas import tpu as pltpu


def film_kernel(emb_ref, x_ref, gamma_ref, beta_ref,
                w1_ref, b1_ref, w2_ref, b2_ref,
                wh_ref, bh_ref, out_ref):
    # x tile streamed as bf16 (TN, H); emb row for this depth (1, H) f32.
    z = x_ref[...].astype(jnp.float32) + emb_ref[...]

    # LayerNorm over last dim, eps = 1e-6 (matches nn.LayerNorm(hidden, eps=1e-06)).
    mu = jnp.mean(z, axis=-1, keepdims=True)
    var = jnp.mean((z - mu) * (z - mu), axis=-1, keepdims=True)
    y = (z - mu) * jax.lax.rsqrt(var + 1e-6)
    y = y * gamma_ref[...] + beta_ref[...]

    # MLP: Linear(H, H/2) -> ReLU -> Linear(H/2, H/2) -> ReLU
    # bf16 operands on the MXU, f32 accumulation.
    h1 = jnp.dot(y.astype(jnp.bfloat16), w1_ref[...],
                 preferred_element_type=jnp.float32) + b1_ref[...]
    h1 = jnp.maximum(h1, 0.0)
    h2 = jnp.dot(h1.astype(jnp.bfloat16), w2_ref[...],
                 preferred_element_type=jnp.float32) + b2_ref[...]
    h2 = jnp.maximum(h2, 0.0)

    # Fused FiLM heads ([scale | bias]) -- FLOP-negligible, kept in f32.
    heads = jnp.dot(h2, wh_ref[...], preferred_element_type=jnp.float32) + bh_ref[...]

    # Store transposed (2C, TN): lane dim = TN (multiple of 128) => unmasked stores.
    out_ref[...] = heads.T.astype(out_ref.dtype)


def film_generator_pallas(x, params, *, tn=512):
    """x: (B, T, hidden) f32 -> (scales, biases), each (depth, B, T, channel)."""
    B, T, hidden = x.shape
    N = B * T
    emb = params["emb"]                      # (depth, hidden)
    depth = emb.shape[0]
    half = params["w1"].shape[1]
    channel = params["ws"].shape[1]
    two_c = 2 * channel

    # Fuse the two heads once at trace time (f32 for accuracy; cost negligible).
    wh = jnp.concatenate([params["ws"], params["wb"]], axis=1)   # (half, 2C)
    bh = jnp.concatenate([params["bs"], params["bb"]], axis=1)   # (1, 2C)

    # Pre-cast MLP weights to bf16 (hoisted; f32 accumulation in-kernel).
    w1 = params["w1"].astype(jnp.bfloat16)
    w2 = params["w2"].astype(jnp.bfloat16)

    # emb as (depth, 1, hidden) so the block's trailing two dims are full-extent.
    emb3 = emb.reshape(depth, 1, hidden)

    # --- row-tile selection -------------------------------------------------
    # Shrink tn to the next multiple of 128 >= N for small problems (avoids
    # computing/storing mostly padding), and size against v7x's 64 MiB VMEM:
    # double-buffered x (bf16) + double-buffered output + weights < ~40 MiB.
    tn = min(int(tn), ((max(N, 1) + 127) // 128) * 128)
    tn = max(128, (tn // 128) * 128)
    weight_bytes = ((hidden * half + half * half) * 2        # bf16 W1, W2
                    + half * two_c * 4                        # f32 fused head
                    + (4 * hidden + 2 * half + two_c) * 4)    # small vectors
    def _tile_bytes(t):
        return 2 * (t * hidden * 2) + 2 * (two_c * t * 4) + weight_bytes
    while tn > 128 and _tile_bytes(tn) > 40 * 1024 * 1024:
        tn -= 128

    # Flatten (B, T) -> rows, stream as bf16, pad to a multiple of the row tile.
    x2d = x.reshape(N, hidden).astype(jnp.bfloat16)
    n_pad = ((N + tn - 1) // tn) * tn
    if n_pad != N:
        x2d = jnp.pad(x2d, ((0, n_pad - N), (0, 0)))

    # depth is the INNER grid axis -> x block index constant across it (reuse).
    grid = (n_pad // tn, depth)

    def _build_and_run(single_buffer_weights):
        def const_spec(shape):
            nb = len(shape)
            idx = lambda t, d, _n=nb: (0,) * _n
            if single_buffer_weights:
                return pl.BlockSpec(shape, idx, pipeline_mode=pl.Buffered(1))
            return pl.BlockSpec(shape, idx)

        grid_spec = pltpu.PrefetchScalarGridSpec(
            num_scalar_prefetch=0,
            grid=grid,
            in_specs=[
                pl.BlockSpec((None, 1, hidden), lambda t, d: (d, 0, 0)),  # emb row
                pl.BlockSpec((tn, hidden), lambda t, d: (t, 0)),          # x tile (bf16)
                const_spec((1, hidden)),                                  # LN gamma
                const_spec((1, hidden)),                                  # LN beta
                const_spec((hidden, half)),                               # W1 (bf16)
                const_spec((1, half)),                                    # b1
                const_spec((half, half)),                                 # W2 (bf16)
                const_spec((1, half)),                                    # b2
                const_spec((half, two_c)),                                # [Ws | Wb] (f32)
                const_spec((1, two_c)),                                   # [bs | bb]
            ],
            out_specs=pl.BlockSpec((None, two_c, tn), lambda t, d: (d, 0, t)),
        )

        return pl.pallas_call(
            film_kernel,
            grid_spec=grid_spec,
            out_shape=jax.ShapeDtypeStruct((depth, two_c, n_pad), jnp.float32),
            compiler_params=pltpu.CompilerParams(
                dimension_semantics=("parallel", "arbitrary"),
                vmem_limit_bytes=48 * 1024 * 1024,
            ),
        )(
            emb3, x2d,
            params["gamma"], params["beta"],
            w1, params["b1"],
            w2, params["b2"],
            wh, bh,
        )

    try:
        out = _build_and_run(True)
    except Exception:
        # Fallback if pipeline_mode=pl.Buffered(1) is unsupported on this
        # Pallas version: default double-buffering (correctness identical).
        out = _build_and_run(False)

    # (depth, 2C, N_pad) -> drop padding, back to (depth, N, 2C), split heads.
    # TODO(synk): if the downstream FiLM apply can consume the (depth, 2C, N)
    # layout directly, drop this transpose (it is a full extra HBM pass).
    out = jnp.transpose(out[:, :, :N], (0, 2, 1))
    scales = out[..., :channel].reshape(depth, B, T, channel)
    biases = out[..., channel:].reshape(depth, B, T, channel)
    return scales, biases


def film_generator_ref(x, params):
    """Plain-JAX f32 reference matching the PyTorch forward semantics."""
    B, T, hidden = x.shape
    N = B * T
    x2d = x.reshape(N, hidden)
    depth = params["emb"].shape[0]
    scales, biases = [], []
    for d in range(depth):
        z = x2d + params["emb"][d][None, :]
        mu = jnp.mean(z, axis=-1, keepdims=True)
        var = jnp.mean((z - mu) ** 2, axis=-1, keepdims=True)
        y = (z - mu) / jnp.sqrt(var + 1e-6)
        y = y * params["gamma"] + params["beta"]
        h1 = jnp.maximum(y @ params["w1"] + params["b1"], 0.0)
        h2 = jnp.maximum(h1 @ params["w2"] + params["b2"], 0.0)
        scales.append((h2 @ params["ws"] + params["bs"]).reshape(B, T, -1))
        biases.append((h2 @ params["wb"] + params["bb"]).reshape(B, T, -1))
    return jnp.stack(scales), jnp.stack(biases)


def init_params(key, hidden, channel, depth):
    half = hidden // 2
    ks = jax.random.split(key, 8)
    scale = 0.1
    params = {
        "emb": scale * jax.random.normal(ks[0], (depth, hidden), jnp.float32),
        "gamma": jnp.ones((1, hidden), jnp.float32),
        "beta": jnp.zeros((1, hidden), jnp.float32),
        # Linear weights stored as (in, out) == torch weight.T
        "w1": scale * jax.random.normal(ks[1], (hidden, half), jnp.float32),
        "b1": scale * jax.random.normal(ks[2], (1, half), jnp.float32),
        "w2": scale * jax.random.normal(ks[3], (half, half), jnp.float32),
        "b2": scale * jax.random.normal(ks[4], (1, half), jnp.float32),
        "ws": scale * jax.random.normal(ks[5], (half, channel), jnp.float32),
        "bs": jnp.zeros((1, channel), jnp.float32),
        "wb": scale * jax.random.normal(ks[6], (half, channel), jnp.float32),
        "bb": jnp.zeros((1, channel), jnp.float32),
    }
    return params


if __name__ == "__main__":
    B, T, hidden, channel, depth = 2, 8, 32, 4, 3

    key = jax.random.PRNGKey(0)
    k_x, k_p = jax.random.split(key)
    x = jax.random.normal(k_x, (B, T, hidden), jnp.float32)
    params = init_params(k_p, hidden, channel, depth)

    scales, biases = film_generator_pallas(x, params)
    jax.block_until_ready((scales, biases))

    # Sanity check against the plain-JAX f32 reference.
    scales_ref, biases_ref = film_generator_ref(x, params)
    assert scales.shape == (depth, B, T, channel)
    assert biases.shape == (depth, B, T, channel)
    # bf16 x / MLP weights with f32 accumulation -> allow ~1e-2 level tolerance.
    assert jnp.allclose(scales, scales_ref, atol=2e-2, rtol=2e-2)
    assert jnp.allclose(biases, biases_ref, atol=2e-2, rtol=2e-2)

    print("KERNEL_OK")
</pallas_src>

<mosaic_0001>
module attributes {stable_mosaic.version = 11 : i64} {
  func.func @film_kernel(%arg0: i32, %arg1: i32, %arg2: memref<1x1x32xf32, #tpu.memory_space<vmem>>, %arg3: memref<128x32xbf16, #tpu.memory_space<vmem>>, %arg4: memref<1x32xf32, #tpu.memory_space<vmem>>, %arg5: memref<1x32xf32, #tpu.memory_space<vmem>>, %arg6: memref<32x16xbf16, #tpu.memory_space<vmem>>, %arg7: memref<1x16xf32, #tpu.memory_space<vmem>>, %arg8: memref<16x16xbf16, #tpu.memory_space<vmem>>, %arg9: memref<1x16xf32, #tpu.memory_space<vmem>>, %arg10: memref<16x8xf32, #tpu.memory_space<vmem>>, %arg11: memref<1x8xf32, #tpu.memory_space<vmem>>, %arg12: memref<1x8x128xf32, #tpu.memory_space<vmem>>) attributes {dimension_semantics = [#tpu.dimension_semantics<parallel>, #tpu.dimension_semantics<arbitrary>], iteration_bounds = array<i64: 1, 3>, scalar_prefetch = 0 : i64, scratch_operands = 0 : i64, tpu.core_type = #tpu.core_type<tc>, window_params = [{transform_indices = @transform_0, window_bounds = array<i64: 1, 1, 32>}, {transform_indices = @transform_1, window_bounds = array<i64: 128, 32>}, {pipeline_mode = #tpu.pipeline_mode<synchronous>, transform_indices = @transform_2, window_bounds = array<i64: 1, 32>}, {pipeline_mode = #tpu.pipeline_mode<synchronous>, transform_indices = @transform_3, window_bounds = array<i64: 1, 32>}, {pipeline_mode = #tpu.pipeline_mode<synchronous>, transform_indices = @transform_4, window_bounds = array<i64: 32, 16>}, {pipeline_mode = #tpu.pipeline_mode<synchronous>, transform_indices = @transform_5, window_bounds = array<i64: 1, 16>}, {pipeline_mode = #tpu.pipeline_mode<synchronous>, transform_indices = @transform_6, window_bounds = array<i64: 16, 16>}, {pipeline_mode = #tpu.pipeline_mode<synchronous>, transform_indices = @transform_7, window_bounds = array<i64: 1, 16>}, {pipeline_mode = #tpu.pipeline_mode<synchronous>, transform_indices = @transform_8, window_bounds = array<i64: 16, 8>}, {pipeline_mode = #tpu.pipeline_mode<synchronous>, transform_indices = @transform_9, window_bounds = array<i64: 1, 8>}, {transform_indices = @transform_10, window_bounds = array<i64: 1, 8, 128>}]} {
    %c0 = arith.constant 0 : index
    %c0_0 = arith.constant 0 : index
    %0 = vector.load %arg3[%c0, %c0_0] : memref<128x32xbf16, #tpu.memory_space<vmem>>, vector<128x32xbf16>
    %1 = arith.extf %0 : vector<128x32xbf16> to vector<128x32xf32>
    %c0_1 = arith.constant 0 : index
    %c0_2 = arith.constant 0 : index
    %c0_3 = arith.constant 0 : index
    %2 = vector.load %arg2[%c0_1, %c0_2, %c0_3] : memref<1x1x32xf32, #tpu.memory_space<vmem>>, vector<1x1x32xf32>
    %3 = vector.shape_cast %2 : vector<1x1x32xf32> to vector<1x32xf32>
    %4 = vector.broadcast %3 : vector<1x32xf32> to vector<128x32xf32>
    %5 = arith.addf %1, %4 : vector<128x32xf32>
    %cst = arith.constant dense<0.000000e+00> : vector<128xf32>
    %6 = vector.multi_reduction <add>, %5, %cst [1] : vector<128x32xf32> to vector<128xf32>
    %7 = vector.shape_cast %6 : vector<128xf32> to vector<128x1xf32>
    %cst_4 = arith.constant 3.200000e+01 : f32
    %8 = vector.broadcast %cst_4 : f32 to vector<128x1xf32>
    %9 = arith.divf %7, %8 : vector<128x1xf32>
    %10 = vector.broadcast %9 : vector<128x1xf32> to vector<128x32xf32>
    %11 = arith.subf %5, %10 : vector<128x32xf32>
    %12 = vector.broadcast %9 : vector<128x1xf32> to vector<128x32xf32>
    %13 = arith.subf %5, %12 : vector<128x32xf32>
    %14 = arith.mulf %11, %13 : vector<128x32xf32>
    %cst_5 = arith.constant dense<0.000000e+00> : vector<128xf32>
    %15 = vector.multi_reduction <add>, %14, %cst_5 [1] : vector<128x32xf32> to vector<128xf32>
    %16 = vector.shape_cast %15 : vector<128xf32> to vector<128x1xf32>
    %cst_6 = arith.constant 3.200000e+01 : f32
    %17 = vector.broadcast %cst_6 : f32 to vector<128x1xf32>
    %18 = arith.divf %16, %17 : vector<128x1xf32>
    %19 = vector.broadcast %9 : vector<128x1xf32> to vector<128x32xf32>
    %20 = arith.subf %5, %19 : vector<128x32xf32>
    %cst_7 = arith.constant 9.99999997E-7 : f32
    %21 = vector.broadcast %cst_7 : f32 to vector<128x1xf32>
    %22 = arith.addf %18, %21 : vector<128x1xf32>
    %23 = math.rsqrt %22 : vector<128x1xf32>
    %24 = vector.broadcast %23 : vector<128x1xf32> to vector<128x32xf32>
    %25 = arith.mulf %20, %24 : vector<128x32xf32>
    %c0_8 = arith.constant 0 : index
    %c0_9 = arith.constant 0 : index
    %26 = vector.load %arg4[%c0_8, %c0_9] : memref<1x32xf32, #tpu.memory_space<vmem>>, vector<1x32xf32>
    %27 = vector.broadcast %26 : vector<1x32xf32> to vector<128x32xf32>
    %28 = arith.mulf %25, %27 : vector<128x32xf32>
    %c0_10 = arith.constant 0 : index
    %c0_11 = arith.constant 0 : index
    %29 = vector.load %arg5[%c0_10, %c0_11] : memref<1x32xf32, #tpu.memory_space<vmem>>, vector<1x32xf32>
    %30 = vector.broadcast %29 : vector<1x32xf32> to vector<128x32xf32>
    %31 = arith.addf %28, %30 : vector<128x32xf32>
    %32 = arith.truncf %31 : vector<128x32xf32> to vector<128x32xbf16>
    %c0_12 = arith.constant 0 : index
    %c0_13 = arith.constant 0 : index
    %33 = vector.load %arg6[%c0_12, %c0_13] : memref<32x16xbf16, #tpu.memory_space<vmem>>, vector<32x16xbf16>
    %cst_14 = arith.constant dense<0.000000e+00> : vector<128x16xf32>
    %34 = tpu.matmul %32, %33, %cst_14 {dimension_numbers = #tpu.dot_dimension_numbers<[1], [0], [0], [1], [0, 0, 1, 1], [], []>} : vector<128x32xbf16>, vector<32x16xbf16>, vector<128x16xf32> -> vector<128x16xf32>
    %c0_15 = arith.constant 0 : index
    %c0_16 = arith.constant 0 : index
    %35 = vector.load %arg7[%c0_15, %c0_16] : memref<1x16xf32, #tpu.memory_space<vmem>>, vector<1x16xf32>
    %36 = vector.broadcast %35 : vector<1x16xf32> to vector<128x16xf32>
    %37 = arith.addf %34, %36 : vector<128x16xf32>
    %cst_17 = arith.constant 0.000000e+00 : f32
    %38 = vector.broadcast %cst_17 : f32 to vector<128x16xf32>
    %39 = arith.maximumf %37, %38 : vector<128x16xf32>
    %40 = arith.truncf %39 : vector<128x16xf32> to vector<128x16xbf16>
    %c0_18 = arith.constant 0 : index
    %c0_19 = arith.constant 0 : index
    %41 = vector.load %arg8[%c0_18, %c0_19] : memref<16x16xbf16, #tpu.memory_space<vmem>>, vector<16x16xbf16>
    %cst_20 = arith.constant dense<0.000000e+00> : vector<128x16xf32>
    %42 = tpu.matmul %40, %41, %cst_20 {dimension_numbers = #tpu.dot_dimension_numbers<[1], [0], [0], [1], [0, 0, 1, 1], [], []>} : vector<128x16xbf16>, vector<16x16xbf16>, vector<128x16xf32> -> vector<128x16xf32>
    %c0_21 = arith.constant 0 : index
    %c0_22 = arith.constant 0 : index
    %43 = vector.load %arg9[%c0_21, %c0_22] : memref<1x16xf32, #tpu.memory_space<vmem>>, vector<1x16xf32>
    %44 = vector.broadcast %43 : vector<1x16xf32> to vector<128x16xf32>
    %45 = arith.addf %42, %44 : vector<128x16xf32>
    %cst_23 = arith.constant 0.000000e+00 : f32
    %46 = vector.broadcast %cst_23 : f32 to vector<128x16xf32>
    %47 = arith.maximumf %45, %46 : vector<128x16xf32>
    %c0_24 = arith.constant 0 : index
    %c0_25 = arith.constant 0 : index
    %48 = vector.load %arg10[%c0_24, %c0_25] : memref<16x8xf32, #tpu.memory_space<vmem>>, vector<16x8xf32>
    %cst_26 = arith.constant dense<0.000000e+00> : vector<128x8xf32>
    %49 = tpu.matmul %47, %48, %cst_26 {dimension_numbers = #tpu.dot_dimension_numbers<[1], [0], [0], [1], [0, 0, 1, 1], [], []>} : vector<128x16xf32>, vector<16x8xf32>, vector<128x8xf32> -> vector<128x8xf32>
    %c0_27 = arith.constant 0 : index
    %c0_28 = arith.constant 0 : index
    %50 = vector.load %arg11[%c0_27, %c0_28] : memref<1x8xf32, #tpu.memory_space<vmem>>, vector<1x8xf32>
    %51 = vector.broadcast %50 : vector<1x8xf32> to vector<128x8xf32>
    %52 = arith.addf %49, %51 : vector<128x8xf32>
    %53 = tpu.transpose %52, [1, 0] : vector<128x8xf32> -> vector<8x128xf32>
    %c0_29 = arith.constant 0 : index
    %c0_30 = arith.constant 0 : index
    %c0_31 = arith.constant 0 : index
    %54 = vector.load %arg12[%c0_29, %c0_30, %c0_31] : memref<1x8x128xf32, #tpu.memory_space<vmem>>, vector<1x8x128xf32>
    %55 = vector.shape_cast %54 : vector<1x8x128xf32> to vector<8x128xf32>
    %56 = vector.shape_cast %53 : vector<8x128xf32> to vector<1x8x128xf32>
    tpu.vector_store %arg12[%c0_29, %c0_30, %c0_31], %56 {strides = array<i32>} : memref<1x8x128xf32, #tpu.memory_space<vmem>>, vector<1x8x128xf32>,
    return
  }
  func.func @transform_0(%arg0: i32, %arg1: i32) -> (i32, i32, i32) {
    %c0_i32 = arith.constant 0 : i32
    %c0_i32_0 = arith.constant 0 : i32
    %c0_i32_1 = arith.constant 0 : i32
    return %arg1, %c0_i32, %c0_i32_0 : i32, i32, i32
  }
  func.func @transform_1(%arg0: i32, %arg1: i32) -> (i32, i32) {
    %c0_i32 = arith.constant 0 : i32
    %c0_i32_0 = arith.constant 0 : i32
    return %arg0, %c0_i32 : i32, i32
  }
  func.func @transform_2(%arg0: i32, %arg1: i32) -> (i32, i32) {
    %c0_i32 = arith.constant 0 : i32
    %c0_i32_0 = arith.constant 0 : i32
    %c0_i32_1 = arith.constant 0 : i32
    return %c0_i32, %c0_i32_0 : i32, i32
  }
  func.func @transform_3(%arg0: i32, %arg1: i32) -> (i32, i32) {
    %c0_i32 = arith.constant 0 : i32
    %c0_i32_0 = arith.constant 0 : i32
    %c0_i32_1 = arith.constant 0 : i32
    return %c0_i32, %c0_i32_0 : i32, i32
  }
  func.func @transform_4(%arg0: i32, %arg1: i32) -> (i32, i32) {
    %c0_i32 = arith.constant 0 : i32
    %c0_i32_0 = arith.constant 0 : i32
    %c0_i32_1 = arith.constant 0 : i32
    return %c0_i32, %c0_i32_0 : i32, i32
  }
  func.func @transform_5(%arg0: i32, %arg1: i32) -> (i32, i32) {
    %c0_i32 = arith.constant 0 : i32
    %c0_i32_0 = arith.constant 0 : i32
    %c0_i32_1 = arith.constant 0 : i32
    return %c0_i32, %c0_i32_0 : i32, i32
  }
  func.func @transform_6(%arg0: i32, %arg1: i32) -> (i32, i32) {
    %c0_i32 = arith.constant 0 : i32
    %c0_i32_0 = arith.constant 0 : i32
    %c0_i32_1 = arith.constant 0 : i32
    return %c0_i32, %c0_i32_0 : i32, i32
  }
  func.func @transform_7(%arg0: i32, %arg1: i32) -> (i32, i32) {
    %c0_i32 = arith.constant 0 : i32
    %c0_i32_0 = arith.constant 0 : i32
    %c0_i32_1 = arith.constant 0 : i32
    return %c0_i32, %c0_i32_0 : i32, i32
  }
  func.func @transform_8(%arg0: i32, %arg1: i32) -> (i32, i32) {
    %c0_i32 = arith.constant 0 : i32
    %c0_i32_0 = arith.constant 0 : i32
    %c0_i32_1 = arith.constant 0 : i32
    return %c0_i32, %c0_i32_0 : i32, i32
  }
  func.func @transform_9(%arg0: i32, %arg1: i32) -> (i32, i32) {
    %c0_i32 = arith.constant 0 : i32
    %c0_i32_0 = arith.constant 0 : i32
    %c0_i32_1 = arith.constant 0 : i32
    return %c0_i32, %c0_i32_0 : i32, i32
  }
  func.func @transform_10(%arg0: i32, %arg1: i32) -> (i32, i32, i32) {
    %c0_i32 = arith.constant 0 : i32
    %c0_i32_0 = arith.constant 0 : i32
    return %arg1, %c0_i32, %arg0 : i32, i32, i32
  }
}

module attributes {stable_mosaic.version = 11 : i64} {
  func.func @film_kernel(%arg0: i32, %arg1: i32, %arg2: memref<1x1x32xf32, #tpu.memory_space<vmem>>, %arg3: memref<128x32xbf16, #tpu.memory_space<vmem>>, %arg4: memref<1x32xf32, #tpu.memory_space<vmem>>, %arg5: memref<1x32xf32, #tpu.memory_space<vmem>>, %arg6: memref<32x16xbf16, #tpu.memory_space<vmem>>, %arg7: memref<1x16xf32, #tpu.memory_space<vmem>>, %arg8: memref<16x16xbf16, #tpu.memory_space<vmem>>, %arg9: memref<1x16xf32, #tpu.memory_space<vmem>>, %arg10: memref<16x8xf32, #tpu.memory_space<vmem>>, %arg11: memref<1x8xf32, #tpu.memory_space<vmem>>, %arg12: memref<1x8x128xf32, #tpu.memory_space<vmem>>) attributes {dimension_semantics = [#tpu.dimension_semantics<parallel>, #tpu.dimension_semantics<arbitrary>], iteration_bounds = array<i64: 1, 3>, scalar_prefetch = 0 : i64, scratch_operands = 0 : i64, tpu.core_type = #tpu.core_type<tc>, window_params = [{transform_indices = @transform_0, window_bounds = array<i64: 1, 1, 32>}, {transform_indices = @transform_1, window_bounds = array<i64: 128, 32>}, {pipeline_mode = #tpu.pipeline_mode<synchronous>, transform_indices = @transform_2, window_bounds = array<i64: 1, 32>}, {pipeline_mode = #tpu.pipeline_mode<synchronous>, transform_indices = @transform_3, window_bounds = array<i64: 1, 32>}, {pipeline_mode = #tpu.pipeline_mode<synchronous>, transform_indices = @transform_4, window_bounds = array<i64: 32, 16>}, {pipeline_mode = #tpu.pipeline_mode<synchronous>, transform_indices = @transform_5, window_bounds = array<i64: 1, 16>}, {pipeline_mode = #tpu.pipeline_mode<synchronous>, transform_indices = @transform_6, window_bounds = array<i64: 16, 16>}, {pipeline_mode = #tpu.pipeline_mode<synchronous>, transform_indices = @transform_7, window_bounds = array<i64: 1, 16>}, {pipeline_mode = #tpu.pipeline_mode<synchronous>, transform_indices = @transform_8, window_bounds = array<i64: 16, 8>}, {pipeline_mode = #tpu.pipeline_mode<synchronous>, transform_indices = @transform_9, window_bounds = array<i64: 1, 8>}, {transform_indices = @transform_10, window_bounds = array<i64: 1, 8, 128>}]} {
    %c0 = arith.constant 0 : index
    %c0_0 = arith.constant 0 : index
    %0 = vector.load %arg3[%c0, %c0_0] : memref<128x32xbf16, #tpu.memory_space<vmem>>, vector<128x32xbf16>
    %1 = arith.extf %0 : vector<128x32xbf16> to vector<128x32xf32>
    %c0_1 = arith.constant 0 : index
    %c0_2 = arith.constant 0 : index
    %c0_3 = arith.constant 0 : index
    %2 = vector.load %arg2[%c0_1, %c0_2, %c0_3] : memref<1x1x32xf32, #tpu.memory_space<vmem>>, vector<1x1x32xf32>
    %3 = vector.shape_cast %2 : vector<1x1x32xf32> to vector<1x32xf32>
    %4 = vector.broadcast %3 : vector<1x32xf32> to vector<128x32xf32>
    %5 = arith.addf %1, %4 : vector<128x32xf32>
    %cst = arith.constant dense<0.000000e+00> : vector<128xf32>
    %6 = vector.multi_reduction <add>, %5, %cst [1] : vector<128x32xf32> to vector<128xf32>
    %7 = vector.shape_cast %6 : vector<128xf32> to vector<128x1xf32>
    %cst_4 = arith.constant 3.200000e+01 : f32
    %8 = vector.broadcast %cst_4 : f32 to vector<128x1xf32>
    %9 = arith.divf %7, %8 : vector<128x1xf32>
    %10 = vector.broadcast %9 : vector<128x1xf32> to vector<128x32xf32>
    %11 = arith.subf %5, %10 : vector<128x32xf32>
    %12 = vector.broadcast %9 : vector<128x1xf32> to vector<128x32xf32>
    %13 = arith.subf %5, %12 : vector<128x32xf32>
    %14 = arith.mulf %11, %13 : vector<128x32xf32>
    %cst_5 = arith.constant dense<0.000000e+00> : vector<128xf32>
    %15 = vector.multi_reduction <add>, %14, %cst_5 [1] : vector<128x32xf32> to vector<128xf32>
    %16 = vector.shape_cast %15 : vector<128xf32> to vector<128x1xf32>
    %cst_6 = arith.constant 3.200000e+01 : f32
    %17 = vector.broadcast %cst_6 : f32 to vector<128x1xf32>
    %18 = arith.divf %16, %17 : vector<128x1xf32>
    %19 = vector.broadcast %9 : vector<128x1xf32> to vector<128x32xf32>
    %20 = arith.subf %5, %19 : vector<128x32xf32>
    %cst_7 = arith.constant 9.99999997E-7 : f32
    %21 = vector.broadcast %cst_7 : f32 to vector<128x1xf32>
    %22 = arith.addf %18, %21 : vector<128x1xf32>
    %23 = math.rsqrt %22 : vector<128x1xf32>
    %24 = vector.broadcast %23 : vector<128x1xf32> to vector<128x32xf32>
    %25 = arith.mulf %20, %24 : vector<128x32xf32>
    %c0_8 = arith.constant 0 : index
    %c0_9 = arith.constant 0 : index
    %26 = vector.load %arg4[%c0_8, %c0_9] : memref<1x32xf32, #tpu.memory_space<vmem>>, vector<1x32xf32>
    %27 = vector.broadcast %26 : vector<1x32xf32> to vector<128x32xf32>
    %28 = arith.mulf %25, %27 : vector<128x32xf32>
    %c0_10 = arith.constant 0 : index
    %c0_11 = arith.constant 0 : index
    %29 = vector.load %arg5[%c0_10, %c0_11] : memref<1x32xf32, #tpu.memory_space<vmem>>, vector<1x32xf32>
    %30 = vector.broadcast %29 : vector<1x32xf32> to vector<128x32xf32>
    %31 = arith.addf %28, %30 : vector<128x32xf32>
    %32 = arith.truncf %31 : vector<128x32xf32> to vector<128x32xbf16>
    %c0_12 = arith.constant 0 : index
    %c0_13 = arith.constant 0 : index
    %33 = vector.load %arg6[%c0_12, %c0_13] : memref<32x16xbf16, #tpu.memory_space<vmem>>, vector<32x16xbf16>
    %cst_14 = arith.constant dense<0.000000e+00> : vector<128x16xf32>
    %34 = tpu.matmul %32, %33, %cst_14 {dimension_numbers = #tpu.dot_dimension_numbers<[1], [0], [0], [1], [0, 0, 1, 1], [], []>} : vector<128x32xbf16>, vector<32x16xbf16>, vector<128x16xf32> -> vector<128x16xf32>
    %c0_15 = arith.constant 0 : index
    %c0_16 = arith.constant 0 : index
    %35 = vector.load %arg7[%c0_15, %c0_16] : memref<1x16xf32, #tpu.memory_space<vmem>>, vector<1x16xf32>
    %36 = vector.broadcast %35 : vector<1x16xf32> to vector<128x16xf32>
    %37 = arith.addf %34, %36 : vector<128x16xf32>
    %cst_17 = arith.constant 0.000000e+00 : f32
    %38 = vector.broadcast %cst_17 : f32 to vector<128x16xf32>
    %39 = arith.maximumf %37, %38 : vector<128x16xf32>
    %40 = arith.truncf %39 : vector<128x16xf32> to vector<128x16xbf16>
    %c0_18 = arith.constant 0 : index
    %c0_19 = arith.constant 0 : index
    %41 = vector.load %arg8[%c0_18, %c0_19] : memref<16x16xbf16, #tpu.memory_space<vmem>>, vector<16x16xbf16>
    %cst_20 = arith.constant dense<0.000000e+00> : vector<128x16xf32>
    %42 = tpu.matmul %40, %41, %cst_20 {dimension_numbers = #tpu.dot_dimension_numbers<[1], [0], [0], [1], [0, 0, 1, 1], [], []>} : vector<128x16xbf16>, vector<16x16xbf16>, vector<128x16xf32> -> vector<128x16xf32>
    %c0_21 = arith.constant 0 : index
    %c0_22 = arith.constant 0 : index
    %43 = vector.load %arg9[%c0_21, %c0_22] : memref<1x16xf32, #tpu.memory_space<vmem>>, vector<1x16xf32>
    %44 = vector.broadcast %43 : vector<1x16xf32> to vector<128x16xf32>
    %45 = arith.addf %42, %44 : vector<128x16xf32>
    %cst_23 = arith.constant 0.000000e+00 : f32
    %46 = vector.broadcast %cst_23 : f32 to vector<128x16xf32>
    %47 = arith.maximumf %45, %46 : vector<128x16xf32>
    %c0_24 = arith.constant 0 : index
    %c0_25 = arith.constant 0 : index
    %48 = vector.load %arg10[%c0_24, %c0_25] : memref<16x8xf32, #tpu.memory_space<vmem>>, vector<16x8xf32>
    %cst_26 = arith.constant dense<0.000000e+00> : vector<128x8xf32>
    %49 = tpu.matmul %47, %48, %cst_26 {dimension_numbers = #tpu.dot_dimension_numbers<[1], [0], [0], [1], [0, 0, 1, 1], [], []>} : vector<128x16xf32>, vector<16x8xf32>, vector<128x8xf32> -> vector<128x8xf32>
    %c0_27 = arith.constant 0 : index
    %c0_28 = arith.constant 0 : index
    %50 = vector.load %arg11[%c0_27, %c0_28] : memref<1x8xf32, #tpu.memory_space<vmem>>, vector<1x8xf32>
    %51 = vector.broadcast %50 : vector<1x8xf32> to vector<128x8xf32>
    %52 = arith.addf %49, %51 : vector<128x8xf32>
    %53 = tpu.transpose %52, [1, 0] : vector<128x8xf32> -> vector<8x128xf32>
    %c0_29 = arith.constant 0 : index
    %c0_30 = arith.constant 0 : index
    %c0_31 = arith.constant 0 : index
    %54 = vector.load %arg12[%c0_29, %c0_30, %c0_31] : memref<1x8x128xf32, #tpu.memory_space<vmem>>, vector<1x8x128xf32>
    %55 = vector.shape_cast %54 : vector<1x8x128xf32> to vector<8x128xf32>
    %56 = vector.shape_cast %53 : vector<8x128xf32> to vector<1x8x128xf32>
    tpu.vector_store %arg12[%c0_29, %c0_30, %c0_31], %56 {strides = array<i32>} : memref<1x8x128xf32, #tpu.memory_space<vmem>>, vector<1x8x128xf32>,
    return
  }
  func.func @transform_0(%arg0: i32, %arg1: i32) -> (i32, i32, i32) {
    %c0_i32 = arith.constant 0 : i32
    %c0_i32_0 = arith.constant 0 : i32
    %c0_i32_1 = arith.constant 0 : i32
    return %arg1, %c0_i32, %c0_i32_0 : i32, i32, i32
  }
  func.func @transform_1(%arg0: i32, %arg1: i32) -> (i32, i32) {
    %c0_i32 = arith.constant 0 : i32
    %c0_i32_0 = arith.constant 0 : i32
    return %arg0, %c0_i32 : i32, i32
  }
  func.func @transform_2(%arg0: i32, %arg1: i32) -> (i32, i32) {
    %c0_i32 = arith.constant 0 : i32
    %c0_i32_0 = arith.constant 0 : i32
    %c0_i32_1 = arith.constant 0 : i32
    return %c0_i32, %c0_i32_0 : i32, i32
  }
  func.func @transform_3(%arg0: i32, %arg1: i32) -> (i32, i32) {
    %c0_i32 = arith.constant 0 : i32
    %c0_i32_0 = arith.constant 0 : i32
    %c0_i32_1 = arith.constant 0 : i32
    return %c0_i32, %c0_i32_0 : i32, i32
  }
  func.func @transform_4(%arg0: i32, %arg1: i32) -> (i32, i32) {
    %c0_i32 = arith.constant 0 : i32
    %c0_i32_0 = arith.constant 0 : i32
    %c0_i32_1 = arith.constant 0 : i32
    return %c0_i32, %c0_i32_0 : i32, i32
  }
  func.func @transform_5(%arg0: i32, %arg1: i32) -> (i32, i32) {
    %c0_i32 = arith.constant 0 : i32
    %c0_i32_0 = arith.constant 0 : i32
    %c0_i32_1 = arith.constant 0 : i32
    return %c0_i32, %c0_i32_0 : i32, i32
  }
  func.func @transform_6(%arg0: i32, %arg1: i32) -> (i32, i32) {
    %c0_i32 = arith.constant 0 : i32
    %c0_i32_0 = arith.constant 0 : i32
    %c0_i32_1 = arith.constant 0 : i32
    return %c0_i32, %c0_i32_0 : i32, i32
  }
  func.func @transform_7(%arg0: i32, %arg1: i32) -> (i32, i32) {
    %c0_i32 = arith.constant 0 : i32
    %c0_i32_0 = arith.constant 0 : i32
    %c0_i32_1 = arith.constant 0 : i32
    return %c0_i32, %c0_i32_0 : i32, i32
  }
  func.func @transform_8(%arg0: i32, %arg1: i32) -> (i32, i32) {
    %c0_i32 = arith.constant 0 : i32
    %c0_i32_0 = arith.constant 0 : i32
    %c0_i32_1 = arith.constant 0 : i32
    return %c0_i32, %c0_i32_0 : i32, i32
  }
  func.func @transform_9(%arg0: i32, %arg1: i32) -> (i32, i32) {
    %c0_i32 = arith.constant 0 : i32
    %c0_i32_0 = arith.constant 0 : i32
    %c0_i32_1 = arith.constant 0 : i32
    return %c0_i32, %c0_i32_0 : i32, i32
  }
  func.func @transform_10(%arg0: i32, %arg1: i32) -> (i32, i32, i32) {
    %c0_i32 = arith.constant 0 : i32
    %c0_i32_0 = arith.constant 0 : i32
    return %arg1, %c0_i32, %arg0 : i32, i32, i32
  }
}

</mosaic_0001>

<llo_original>
// kernel: tpu_custom_call.1
$region0: #{tpu_custom_call.1}
  #allocation0 [shape = 'u32[]', space=smem, size = 0x4, offset = 0x4, fixed_abs, tag = 'smem constant byte address 0x4 - core index']
  #allocation1 [shape = 'u32[144,128]{1,0:T(1,128)}', space=vmem, size = 0x12000, scoped, tag = 'internal scratch']
  %s0 = inlined_call_operand.vmem [shape: f32[3,1,32], index: 0, kind: input, shape index: {}]
  %s1 = inlined_call_operand.vmem [shape: bf16[128,32], index: 1, kind: input, shape index: {}]
  %s2 = inlined_call_operand.vmem [shape: f32[1,32], index: 2, kind: input, shape index: {}]
  %s3 = inlined_call_operand.vmem [shape: f32[1,32], index: 3, kind: input, shape index: {}]
  %s4 = inlined_call_operand.vmem [shape: bf16[32,16], index: 4, kind: input, shape index: {}]
  %s5 = inlined_call_operand.vmem [shape: f32[1,16], index: 5, kind: input, shape index: {}]
  %s6 = inlined_call_operand.vmem [shape: bf16[16,16], index: 6, kind: input, shape index: {}]
  %s7 = inlined_call_operand.vmem [shape: f32[1,16], index: 7, kind: input, shape index: {}]
  %s8 = inlined_call_operand.vmem [shape: f32[16,8], index: 8, kind: input, shape index: {}]
  %s9 = inlined_call_operand.vmem [shape: f32[1,8], index: 9, kind: input, shape index: {}]
  %s10 = inlined_call_operand.hbm [shape: f32[3,8,128], index: 10, kind: output, shape index: {}]
  %s11 = sld [smem:[#allocation0]]
  $region73: #{tpu_custom_call.1} parent=0
    _
  %s13 = ssub.s32 1, %s11
  %s14 = scalar_select 0, %s13, %s11
  $region1: #{tpu_custom_call.1} parent=0
    #allocation2 [shape = 'u8[8192]{0}', space=vmem, size = 0x2000, scoped, tag = 'output window, operand 0']
    #allocation3 [shape = 's32[2]{0}', space=sflag, size = 0x8, scoped, tag = 'scoped memory for tpu_custom_call.1']
    %15 = vsyncpa [#allocation3], 0
    %s16 = scalar_lea.sflag [#allocation3], 1
    %17 = vsyncpa %s16, 0
    loop: start=0, step=1, limit=5
    $region2: #{tpu_custom_call.1} parent=1 // loop_pre_header
      _
    $region3: #{tpu_custom_call.1} parent=1 // loop_header
      %s19 = sphi 0, %s23
      %p20 = scmp.ge.s32.totalorder %s19, 5
      %s26 = sphi 0, %s38
      %s27 = sphi 0, %s34
      %s28 = sphi 0, %s26
      %s29 = sphi 0, %s27
      %s30 = sphi 0, %s28
      %s31 = sphi 0, %s29
      %s41 = sphi 0, %s43
      %s44 = sphi 0, %s41
      %s45 = sphi 0, %s44
      %s61 = sphi 0, %s45
      %s67 = sphi 0, %s69
      %s70 = sphi 0, %s67
      %s71 = sphi 0, %s70
      %s87 = sphi 0, %s71
      %s91 = sphi 0, %s91
      %s93 = sphi 0, %s91
      %s94 = sphi 0, %s93
      %s108 = sphi 0, %s94
      %s112 = sphi 0, %s112
      %s114 = sphi 0, %s112
      %s115 = sphi 0, %s114
      %s129 = sphi 0, %s115
      %s133 = sphi 0, %s133
      %s135 = sphi 0, %s133
      %s136 = sphi 0, %s135
      %s150 = sphi 0, %s136
      %s154 = sphi 0, %s154
      %s156 = sphi 0, %s154
      %s157 = sphi 0, %s156
      %s171 = sphi 0, %s157
      %s175 = sphi 0, %s175
      %s177 = sphi 0, %s175
      %s178 = sphi 0, %s177
      %s192 = sphi 0, %s178
      %s196 = sphi 0, %s196
      %s198 = sphi 0, %s196
      %s199 = sphi 0, %s198
      %s213 = sphi 0, %s199
      %s217 = sphi 0, %s217
      %s219 = sphi 0, %s217
      %s220 = sphi 0, %s219
      %s234 = sphi 0, %s220
      %s238 = sphi 0, %s238
      %s240 = sphi 0, %s238
      %s241 = sphi 0, %s240
      %s255 = sphi 0, %s241
      %s263 = sphi 0, %s265
      %s266 = sphi 0, %s263
      %s267 = sphi 0, %s266
      %s283 = sphi 0, %s267
    $region4: #{tpu_custom_call.1} parent=1 // loop_header_branch
      %22 = sbr.rel (%p20) target = $region8
    $region5: #{tpu_custom_call.1} parent=1 // loop_body
      %s24 = ssub.s32 %s19, 1
      %s25 = ssub.s32 %s19, 2
      %s32 = sadd.s32 1, %s27
      %p33 = scmp.ge.s32.totalorder %s32, 3
      %s34 = scalar_select %p33, 0, %s32
      %s35 = sadd.s32 1, %s26
      %s36 = scalar_select %p33, %s35, %s26
      %p37 = scmp.ge.s32.totalorder %s36, 1
      %s38 = scalar_select %p37, 0, %s36
      %s39 = ssub.s32 %s27, %s34
      %p40 = scmp.eq.s32.totalorder %s39, 0
      %s42 = sadd.s32 %s41, 1
      %s43 = scalar_select %p40, %s41, %s42
      %p46 = pneg %p40
      %p47 = scmp.eq.s32.totalorder %s19, 2
      %p48 = por %p46, %p47
      %p49 = scmp.ne.s32.totalorder %s41, %s44
      %p50 = scmp.eq.s32.totalorder %s19, 0
      %p51 = por %p49, %p50
      %p52 = scmp.ne.s32.totalorder %s41, %s44
      %p53 = scmp.eq.s32.totalorder %s24, 2
      %p54 = por %p52, %p53
      %p55 = scmp.ne.s32.totalorder %s44, %s45
      %p56 = scmp.eq.s32.totalorder %s24, 0
      %p57 = por %p55, %p56
      %p58 = scmp.ne.s32.totalorder %s44, %s45
      %p59 = scmp.eq.s32.totalorder %s25, 2
      %p60 = por %p58, %p59
      %p62 = scmp.ne.s32.totalorder %s45, %s61
      %p63 = scmp.eq.s32.totalorder %s25, 0
      %p64 = por %p62, %p63
      %s65 = ssub.s32 %s26, %s38
      %p66 = scmp.eq.s32.totalorder %s65, 0
      %s68 = sadd.s32 %s67, 1
      %s69 = scalar_select %p66, %s67, %s68
      %p72 = pneg %p66
      %p73 = scmp.eq.s32.totalorder %s19, 2
      %p74 = por %p72, %p73
      %p75 = scmp.ne.s32.totalorder %s67, %s70
      %p76 = scmp.eq.s32.totalorder %s19, 0
      %p77 = por %p75, %p76
      %p78 = scmp.ne.s32.totalorder %s67, %s70
      %p79 = scmp.eq.s32.totalorder %s24, 2
      %p80 = por %p78, %p79
      %p81 = scmp.ne.s32.totalorder %s70, %s71
      %p82 = scmp.eq.s32.totalorder %s24, 0
      %p83 = por %p81, %p82
      %p84 = scmp.ne.s32.totalorder %s70, %s71
      %p85 = scmp.eq.s32.totalorder %s25, 2
      %p86 = por %p84, %p85
      %p88 = scmp.ne.s32.totalorder %s71, %s87
      %p89 = scmp.eq.s32.totalorder %s25, 0
      %p90 = por %p88, %p89
      %s92 = sadd.s32 %s91, 1
      %p95 = scmp.eq.s32.totalorder %s19, 2
      %p96 = scmp.ne.s32.totalorder %s91, %s93
      %p97 = scmp.eq.s32.totalorder %s19, 0
      %p98 = por %p96, %p97
      %p99 = scmp.ne.s32.totalorder %s91, %s93
      %p100 = scmp.eq.s32.totalorder %s24, 2
      %p101 = por %p99, %p100
      %p102 = scmp.ne.s32.totalorder %s93, %s94
      %p103 = scmp.eq.s32.totalorder %s24, 0
      %p104 = por %p102, %p103
      %p105 = scmp.ne.s32.totalorder %s93, %s94
      %p106 = scmp.eq.s32.totalorder %s25, 2
      %p107 = por %p105, %p106
      %p109 = scmp.ne.s32.totalorder %s94, %s108
      %p110 = scmp.eq.s32.totalorder %s25, 0
      %p111 = por %p109, %p110
      %s113 = sadd.s32 %s112, 1
      %p116 = scmp.eq.s32.totalorder %s19, 2
      %p117 = scmp.ne.s32.totalorder %s112, %s114
      %p118 = scmp.eq.s32.totalorder %s19, 0
      %p119 = por %p117, %p118
      %p120 = scmp.ne.s32.totalorder %s112, %s114
      %p121 = scmp.eq.s32.totalorder %s24, 2
      %p122 = por %p120, %p121
      %p123 = scmp.ne.s32.totalorder %s114, %s115
      %p124 = scmp.eq.s32.totalorder %s24, 0
      %p125 = por %p123, %p124
      %p126 = scmp.ne.s32.totalorder %s114, %s115
      %p127 = scmp.eq.s32.totalorder %s25, 2
      %p128 = por %p126, %p127
      %p130 = scmp.ne.s32.totalorder %s115, %s129
      %p131 = scmp.eq.s32.totalorder %s25, 0
      %p132 = por %p130, %p131
      %s134 = sadd.s32 %s133, 1
      %p137 = scmp.eq.s32.totalorder %s19, 2
      %p138 = scmp.ne.s32.totalorder %s133, %s135
      %p139 = scmp.eq.s32.totalorder %s19, 0
      %p140 = por %p138, %p139
      %p141 = scmp.ne.s32.totalorder %s133, %s135
      %p142 = scmp.eq.s32.totalorder %s24, 2
      %p143 = por %p141, %p142
      %p144 = scmp.ne.s32.totalorder %s135, %s136
      %p145 = scmp.eq.s32.totalorder %s24, 0
      %p146 = por %p144, %p145
      %p147 = scmp.ne.s32.totalorder %s135, %s136
      %p148 = scmp.eq.s32.totalorder %s25, 2
      %p149 = por %p147, %p148
      %p151 = scmp.ne.s32.totalorder %s136, %s150
      %p152 = scmp.eq.s32.totalorder %s25, 0
      %p153 = por %p151, %p152
      %s155 = sadd.s32 %s154, 1
      %p158 = scmp.eq.s32.totalorder %s19, 2
      %p159 = scmp.ne.s32.totalorder %s154, %s156
      %p160 = scmp.eq.s32.totalorder %s19, 0
      %p161 = por %p159, %p160
      %p162 = scmp.ne.s32.totalorder %s154, %s156
      %p163 = scmp.eq.s32.totalorder %s24, 2
      %p164 = por %p162, %p163
      %p165 = scmp.ne.s32.totalorder %s156, %s157
      %p166 = scmp.eq.s32.totalorder %s24, 0
      %p167 = por %p165, %p166
      %p168 = scmp.ne.s32.totalorder %s156, %s157
      %p169 = scmp.eq.s32.totalorder %s25, 2
      %p170 = por %p168, %p169
      %p172 = scmp.ne.s32.totalorder %s157, %s171
      %p173 = scmp.eq.s32.totalorder %s25, 0
      %p174 = por %p172, %p173
      %s176 = sadd.s32 %s175, 1
      %p179 = scmp.eq.s32.totalorder %s19, 2
      %p180 = scmp.ne.s32.totalorder %s175, %s177
      %p181 = scmp.eq.s32.totalorder %s19, 0
      %p182 = por %p180, %p181
      %p183 = scmp.ne.s32.totalorder %s175, %s177
      %p184 = scmp.eq.s32.totalorder %s24, 2
      %p185 = por %p183, %p184
      %p186 = scmp.ne.s32.totalorder %s177, %s178
      %p187 = scmp.eq.s32.totalorder %s24, 0
      %p188 = por %p186, %p187
      %p189 = scmp.ne.s32.totalorder %s177, %s178
      %p190 = scmp.eq.s32.totalorder %s25, 2
      %p191 = por %p189, %p190
      %p193 = scmp.ne.s32.totalorder %s178, %s192
      %p194 = scmp.eq.s32.totalorder %s25, 0
      %p195 = por %p193, %p194
      %s197 = sadd.s32 %s196, 1
      %p200 = scmp.eq.s32.totalorder %s19, 2
      %p201 = scmp.ne.s32.totalorder %s196, %s198
      %p202 = scmp.eq.s32.totalorder %s19, 0
      %p203 = por %p201, %p202
      %p204 = scmp.ne.s32.totalorder %s196, %s198
      %p205 = scmp.eq.s32.totalorder %s24, 2
      %p206 = por %p204, %p205
      %p207 = scmp.ne.s32.totalorder %s198, %s199
      %p208 = scmp.eq.s32.totalorder %s24, 0
      %p209 = por %p207, %p208
      %p210 = scmp.ne.s32.totalorder %s198, %s199
      %p211 = scmp.eq.s32.totalorder %s25, 2
      %p212 = por %p210, %p211
      %p214 = scmp.ne.s32.totalorder %s199, %s213
      %p215 = scmp.eq.s32.totalorder %s25, 0
      %p216 = por %p214, %p215
      %s218 = sadd.s32 %s217, 1
      %p221 = scmp.eq.s32.totalorder %s19, 2
      %p222 = scmp.ne.s32.totalorder %s217, %s219
      %p223 = scmp.eq.s32.totalorder %s19, 0
      %p224 = por %p222, %p223
      %p225 = scmp.ne.s32.totalorder %s217, %s219
      %p226 = scmp.eq.s32.totalorder %s24, 2
      %p227 = por %p225, %p226
      %p228 = scmp.ne.s32.totalorder %s219, %s220
      %p229 = scmp.eq.s32.totalorder %s24, 0
      %p230 = por %p228, %p229
      %p231 = scmp.ne.s32.totalorder %s219, %s220
      %p232 = scmp.eq.s32.totalorder %s25, 2
      %p233 = por %p231, %p232
      %p235 = scmp.ne.s32.totalorder %s220, %s234
      %p236 = scmp.eq.s32.totalorder %s25, 0
      %p237 = por %p235, %p236
      %s239 = sadd.s32 %s238, 1
      %p242 = scmp.eq.s32.totalorder %s19, 2
      %p243 = scmp.ne.s32.totalorder %s238, %s240
      %p244 = scmp.eq.s32.totalorder %s19, 0
      %p245 = por %p243, %p244
      %p246 = scmp.ne.s32.totalorder %s238, %s240
      %p247 = scmp.eq.s32.totalorder %s24, 2
      %p248 = por %p246, %p247
      %p249 = scmp.ne.s32.totalorder %s240, %s241
      %p250 = scmp.eq.s32.totalorder %s24, 0
      %p251 = por %p249, %p250
      %p252 = scmp.ne.s32.totalorder %s240, %s241
      %p253 = scmp.eq.s32.totalorder %s25, 2
      %p254 = por %p252, %p253
      %p256 = scmp.ne.s32.totalorder %s241, %s255
      %p257 = scmp.eq.s32.totalorder %s25, 0
      %p258 = por %p256, %p257
      %s259 = ssub.s32 %s27, %s34
      %s260 = ssub.s32 %s26, %s38
      %s261 = sor.u32 %s259, %s260
      %p262 = scmp.eq.s32.totalorder %s261, 0
      %s264 = sadd.s32 %s263, 1
      %s265 = scalar_select %p262, %s263, %s264
      %p268 = pneg %p262
      %p269 = scmp.eq.s32.totalorder %s19, 2
      %p270 = por %p268, %p269
      %p271 = scmp.ne.s32.totalorder %s263, %s266
      %p272 = scmp.eq.s32.totalorder %s19, 0
      %p273 = por %p271, %p272
      %p274 = scmp.ne.s32.totalorder %s263, %s266
      %p275 = scmp.eq.s32.totalorder %s24, 2
      %p276 = por %p274, %p275
      %p277 = scmp.ne.s32.totalorder %s266, %s267
      %p278 = scmp.eq.s32.totalorder %s24, 0
      %p279 = por %p277, %p278
      %p280 = scmp.ne.s32.totalorder %s266, %s267
      %p281 = scmp.eq.s32.totalorder %s25, 2
      %p282 = por %p280, %p281
      %p284 = scmp.ne.s32.totalorder %s267, %s283
      %p285 = scmp.eq.s32.totalorder %s25, 0
      %p286 = por %p284, %p285
      %p287 = scmp.le.s32.totalorder 1, %s19
      %p288 = scmp.lt.s32.totalorder %s19, 4
      %p289 = pnand %p287, %p288
      %p290 = pneg %p289
      // Predicated region
      $region9: #{tpu_custom_call.1} parent=5 // pred_check
        _
      $region10: #{tpu_custom_call.1} parent=5 // pred_check_branch
        %292 = sbr.rel (%p289) target = $region12
      $region11: #{tpu_custom_call.1} parent=5 // pred_region
        %s293 = ssub.s32 %s19, 1
        // Predicated region
        $region13: #{tpu_custom_call.1} parent=11 // pred_check
          %p294 = pneg %p83
        $region14: #{tpu_custom_call.1} parent=11 // pred_check_branch
          %296 = sbr.rel (%p294) target = $region16
        $region15: #{tpu_custom_call.1} parent=11 // pred_region
          %s297 = smul.u32 16, %s28
          %p298 = scmp.lt.s32.totalorder %s297, 15
          %s299 = scalar_select %p298, %s297, 15
          %s300 = smul.addr %s299, 4
          %s301 = scalar_lea.vmem %s1, %s300
          %s302 = smul.u32 16, %s28
        $region16: #{tpu_custom_call.1} parent=11 // pred_fallthru
          _
        // Predicated region
        $region17: #{tpu_custom_call.1} parent=11 // pred_check
          %p303 = pneg %p104
        $region18: #{tpu_custom_call.1} parent=11 // pred_check_branch
          %305 = sbr.rel (%p303) target = $region20
        $region19: #{tpu_custom_call.1} parent=11 // pred_region
          _
        $region20: #{tpu_custom_call.1} parent=11 // pred_fallthru
          _
        // Predicated region
        $region21: #{tpu_custom_call.1} parent=11 // pred_check
          %p306 = pneg %p125
        $region22: #{tpu_custom_call.1} parent=11 // pred_check_branch
          %308 = sbr.rel (%p306) target = $region24
        $region23: #{tpu_custom_call.1} parent=11 // pred_region
          _
        $region24: #{tpu_custom_call.1} parent=11 // pred_fallthru
          _
        // Predicated region
        $region25: #{tpu_custom_call.1} parent=11 // pred_check
          %p309 = pneg %p146
        $region26: #{tpu_custom_call.1} parent=11 // pred_check_branch
          %311 = sbr.rel (%p309) target = $region28
        $region27: #{tpu_custom_call.1} parent=11 // pred_region
          _
        $region28: #{tpu_custom_call.1} parent=11 // pred_fallthru
          _
        // Predicated region
        $region29: #{tpu_custom_call.1} parent=11 // pred_check
          %p312 = pneg %p167
        $region30: #{tpu_custom_call.1} parent=11 // pred_check_branch
          %314 = sbr.rel (%p312) target = $region32
        $region31: #{tpu_custom_call.1} parent=11 // pred_region
          _
        $region32: #{tpu_custom_call.1} parent=11 // pred_fallthru
          _
        // Predicated region
        $region33: #{tpu_custom_call.1} parent=11 // pred_check
          %p315 = pneg %p188
        $region34: #{tpu_custom_call.1} parent=11 // pred_check_branch
          %317 = sbr.rel (%p315) target = $region36
        $region35: #{tpu_custom_call.1} parent=11 // pred_region
          _
        $region36: #{tpu_custom_call.1} parent=11 // pred_fallthru
          _
        // Predicated region
        $region37: #{tpu_custom_call.1} parent=11 // pred_check
          %p318 = pneg %p209
        $region38: #{tpu_custom_call.1} parent=11 // pred_check_branch
          %320 = sbr.rel (%p318) target = $region40
        $region39: #{tpu_custom_call.1} parent=11 // pred_region
          _
        $region40: #{tpu_custom_call.1} parent=11 // pred_fallthru
          _
        // Predicated region
        $region41: #{tpu_custom_call.1} parent=11 // pred_check
          %p321 = pneg %p230
        $region42: #{tpu_custom_call.1} parent=11 // pred_check_branch
          %323 = sbr.rel (%p321) target = $region44
        $region43: #{tpu_custom_call.1} parent=11 // pred_region
          _
        $region44: #{tpu_custom_call.1} parent=11 // pred_fallthru
          _
        // Predicated region
        $region45: #{tpu_custom_call.1} parent=11 // pred_check
          %p324 = pneg %p251
        $region46: #{tpu_custom_call.1} parent=11 // pred_check_branch
          %326 = sbr.rel (%p324) target = $region48
        $region47: #{tpu_custom_call.1} parent=11 // pred_region
          _
        $region48: #{tpu_custom_call.1} parent=11 // pred_fallthru
          _
      $region12: #{tpu_custom_call.1} parent=5 // pred_fallthru
        _
      %p327 = scmp.lt.s32.totalorder %s19, 3
      // Predicated region
      $region49: #{tpu_custom_call.1} parent=5 // pred_check
        %p328 = pneg %p327
      $region50: #{tpu_custom_call.1} parent=5 // pred_check_branch
        %330 = sbr.rel (%p328) target = $region52
      $region51: #{tpu_custom_call.1} parent=5 // pred_region
        // Predicated region
        $region53: #{tpu_custom_call.1} parent=51 // pred_check
          %p331 = pneg %p51
        $region54: #{tpu_custom_call.1} parent=51 // pred_check_branch
          %333 = sbr.rel (%p331) target = $region56
        $region55: #{tpu_custom_call.1} parent=51 // pred_region
          %p334 = scmp.lt.s32.totalorder %s27, 2
          %s335 = scalar_select %p334, %s27, 2
          %s336 = scalar_lea.vmem %s0, %s335
        $region56: #{tpu_custom_call.1} parent=51 // pred_fallthru
          _
      $region52: #{tpu_custom_call.1} parent=5 // pred_fallthru
        _
      %p337 = scmp.le.s32.totalorder 1, %s19
      %p338 = scmp.lt.s32.totalorder %s19, 4
      %p339 = pnand %p337, %p338
      %p340 = pneg %p339
      // Predicated region
      $region57: #{tpu_custom_call.1} parent=5 // pred_check
        _
      $region58: #{tpu_custom_call.1} parent=5 // pred_check_branch
        %342 = sbr.rel (%p339) target = $region60
      $region59: #{tpu_custom_call.1} parent=5 // pred_region
        %s343 = ssub.s32 %s19, 1
        %p344 = scmp.lt.s32.totalorder %s29, 2
        %s345 = scalar_select %p344, %s29, 2
        %s346 = scalar_lea.vmem %s0, %s345
        %p347 = pneg %p57
        %p348 = pneg %p54
        %s349 = smul.u32 16, %s28
        %p350 = scmp.lt.s32.totalorder %s349, 15
        %s351 = scalar_select %p350, %s349, 15
        %s352 = smul.addr %s351, 4
        %s353 = scalar_lea.vmem %s1, %s352
        %p354 = pneg %p83
        %p355 = pneg %p80
        %p356 = pneg %p104
        %p357 = pneg %p101
        %p358 = pneg %p125
        %p359 = pneg %p122
        %p360 = pneg %p146
        %p361 = pneg %p143
        %p362 = pneg %p167
        %p363 = pneg %p164
        %p364 = pneg %p188
        %p365 = pneg %p185
        %p366 = pneg %p209
        %p367 = pneg %p206
        %p368 = pneg %p230
        %p369 = pneg %p227
        %p370 = pneg %p251
        %p371 = pneg %p248
        %p372 = pneg %p279
        %p373 = pneg %p276
        %s374 = sand.u32 %s266, 1
        %s375 = scalar_lea.sflag [#allocation3], %s374
        %s376 = sand.u32 %s266, 1
        %s377 = smul.addr %s376, 8
        %s378 = scalar_lea.vmem [#allocation2], %s377
        %p379 = scmp.lt.s32.totalorder %s29, 2
        %s380 = scalar_select %p379, %s29, 2
        %s381 = scalar_lea.vmem %s0, %s380
        %s382 = smul.u32 16, %s28
        %p383 = scmp.lt.s32.totalorder %s382, 15
        %s384 = scalar_select %p383, %s382, 15
        %s385 = smul.addr %s384, 4
        %s386 = scalar_lea.vmem %s1, %s385
        %s387 = smul.u32 16, %s28
        %v389 = vld [vmem:[%s386] sm:$0xf]
        %v390 = vld [vmem:[%s386 + $0x4] sm:$0xf]
        %v391 = vld [vmem:[%s386 + $0x8] sm:$0xf]
        %v392 = vld [vmem:[%s386 + $0xc] sm:$0xf]
        %v393 = vld [vmem:[%s386 + $0x10] sm:$0xf]
        %v394 = vld [vmem:[%s386 + $0x14] sm:$0xf]
        %v395 = vld [vmem:[%s386 + $0x18] sm:$0xf]
        %v396 = vld [vmem:[%s386 + $0x1c] sm:$0xf]
        %v397 = vld [vmem:[%s386 + $0x20] sm:$0xf]
        %v398 = vld [vmem:[%s386 + $0x24] sm:$0xf]
        %v399 = vld [vmem:[%s386 + $0x28] sm:$0xf]
        %v400 = vld [vmem:[%s386 + $0x2c] sm:$0xf]
        %v401 = vld [vmem:[%s386 + $0x30] sm:$0xf]
        %v402 = vld [vmem:[%s386 + $0x34] sm:$0xf]
        %v403 = vld [vmem:[%s386 + $0x38] sm:$0xf]
        %v404 = vld [vmem:[%s386 + $0x3c] sm:$0xf]
        %v405 = vunpack.c.l.bf16 %v389
        %v406 = vunpack.c.l.bf16 %v390
        %v407 = vunpack.c.l.bf16 %v391
        %v408 = vunpack.c.l.bf16 %v392
        %v409 = vunpack.c.l.bf16 %v393
        %v410 = vunpack.c.l.bf16 %v394
        %v411 = vunpack.c.l.bf16 %v395
        %v412 = vunpack.c.l.bf16 %v396
        %v413 = vunpack.c.l.bf16 %v397
        %v414 = vunpack.c.l.bf16 %v398
        %v415 = vunpack.c.l.bf16 %v399
        %v416 = vunpack.c.l.bf16 %v400
        %v417 = vunpack.c.l.bf16 %v401
        %v418 = vunpack.c.l.bf16 %v402
        %v419 = vunpack.c.l.bf16 %v403
        %v420 = vunpack.c.l.bf16 %v404
        %v421 = vld [vmem:[%s381] sm:$0x1]
        %v423 = vlaneseq
        %v424 = vshrl.u32 %v423, 7
        %v425 = vsub.s32 0, %v424
        %v426 = vrot.slane %v421, %v425
        %v428 = vadd.f32 %v405, %v426
        %v429 = vadd.f32 %v406, %v426
        %v430 = vadd.f32 %v407, %v426
        %v431 = vadd.f32 %v408, %v426
        %v432 = vadd.f32 %v409, %v426
        %v433 = vadd.f32 %v410, %v426
        %v434 = vadd.f32 %v411, %v426
        %v435 = vadd.f32 %v412, %v426
        %v436 = vadd.f32 %v413, %v426
        %v437 = vadd.f32 %v414, %v426
        %v438 = vadd.f32 %v415, %v426
        %v439 = vadd.f32 %v416, %v426
        %v440 = vadd.f32 %v417, %v426
        %v441 = vadd.f32 %v418, %v426
        %v442 = vadd.f32 %v419, %v426
        %v443 = vadd.f32 %v420, %v426
        %vm444 = vcmask 261120
        %v445 = vsel %vm444, %v428, 0.0
        %446 = vadd.xlane.f32.xlu0 %v445
        %v447 = vpop.xlane.xlu0 %446
        %v448 = vsel %vm444, %v429, 0.0
        %449 = vadd.xlane.f32.xlu0 %v448
        %v450 = vpop.xlane.xlu0 %449
        %v451 = vsel %vm444, %v430, 0.0
        %452 = vadd.xlane.f32.xlu0 %v451
        %v453 = vpop.xlane.xlu0 %452
        %v454 = vsel %vm444, %v431, 0.0
        %455 = vadd.xlane.f32.xlu0 %v454
        %v456 = vpop.xlane.xlu0 %455
        %v457 = vsel %vm444, %v432, 0.0
        %458 = vadd.xlane.f32.xlu0 %v457
        %v459 = vpop.xlane.xlu0 %458
        %v460 = vsel %vm444, %v433, 0.0
        %461 = vadd.xlane.f32.xlu0 %v460
        %v462 = vpop.xlane.xlu0 %461
        %v463 = vsel %vm444, %v434, 0.0
        %464 = vadd.xlane.f32.xlu0 %v463
        %v465 = vpop.xlane.xlu0 %464
        %v466 = vsel %vm444, %v435, 0.0
        %467 = vadd.xlane.f32.xlu0 %v466
        %v468 = vpop.xlane.xlu0 %467
        %v469 = vsel %vm444, %v436, 0.0
        %470 = vadd.xlane.f32.xlu0 %v469
        %v471 = vpop.xlane.xlu0 %470
        %v472 = vsel %vm444, %v437, 0.0
        %473 = vadd.xlane.f32.xlu0 %v472
        %v474 = vpop.xlane.xlu0 %473
        %v475 = vsel %vm444, %v438, 0.0
        %476 = vadd.xlane.f32.xlu0 %v475
        %v477 = vpop.xlane.xlu0 %476
        %v478 = vsel %vm444, %v439, 0.0
        %479 = vadd.xlane.f32.xlu0 %v478
        %v480 = vpop.xlane.xlu0 %479
        %v481 = vsel %vm444, %v440, 0.0
        %482 = vadd.xlane.f32.xlu0 %v481
        %v483 = vpop.xlane.xlu0 %482
        %v484 = vsel %vm444, %v441, 0.0
        %485 = vadd.xlane.f32.xlu0 %v484
        %v486 = vpop.xlane.xlu0 %485
        %v487 = vsel %vm444, %v442, 0.0
        %488 = vadd.xlane.f32.xlu0 %v487
        %v489 = vpop.xlane.xlu0 %488
        %v490 = vsel %vm444, %v443, 0.0
        %491 = vadd.xlane.f32.xlu0 %v490
        %v492 = vpop.xlane.xlu0 %491
        %v493 = vrcp.pop 32.0
        %v494 = vmul.f32 %v447, %v493
        %v495 = vmul.f32 %v450, %v493
        %v496 = vmul.f32 %v453, %v493
        %v497 = vmul.f32 %v456, %v493
        %v498 = vmul.f32 %v459, %v493
        %v499 = vmul.f32 %v462, %v493
        %v500 = vmul.f32 %v465, %v493
        %v501 = vmul.f32 %v468, %v493
        %v502 = vmul.f32 %v471, %v493
        %v503 = vmul.f32 %v474, %v493
        %v504 = vmul.f32 %v477, %v493
        %v505 = vmul.f32 %v480, %v493
        %v506 = vmul.f32 %v483, %v493
        %v507 = vmul.f32 %v486, %v493
        %v508 = vmul.f32 %v489, %v493
        %v509 = vmul.f32 %v492, %v493
        %v510 = vsub.f32 %v428, %v494
        %v511 = vsub.f32 %v429, %v495
        %v512 = vsub.f32 %v430, %v496
        %v513 = vsub.f32 %v431, %v497
        %v514 = vsub.f32 %v432, %v498
        %v515 = vsub.f32 %v433, %v499
        %v516 = vsub.f32 %v434, %v500
        %v517 = vsub.f32 %v435, %v501
        %v518 = vsub.f32 %v436, %v502
        %v519 = vsub.f32 %v437, %v503
        %v520 = vsub.f32 %v438, %v504
        %v521 = vsub.f32 %v439, %v505
        %v522 = vsub.f32 %v440, %v506
        %v523 = vsub.f32 %v441, %v507
        %v524 = vsub.f32 %v442, %v508
        %v525 = vsub.f32 %v443, %v509
        %v526 = vmul.f32 %v510, %v510
        %v527 = vmul.f32 %v511, %v511
        %v528 = vmul.f32 %v512, %v512
        %v529 = vmul.f32 %v513, %v513
        %v530 = vmul.f32 %v514, %v514
        %v531 = vmul.f32 %v515, %v515
        %v532 = vmul.f32 %v516, %v516
        %v533 = vmul.f32 %v517, %v517
        %v534 = vmul.f32 %v518, %v518
        %v535 = vmul.f32 %v519, %v519
        %v536 = vmul.f32 %v520, %v520
        %v537 = vmul.f32 %v521, %v521
        %v538 = vmul.f32 %v522, %v522
        %v539 = vmul.f32 %v523, %v523
        %v540 = vmul.f32 %v524, %v524
        %v541 = vmul.f32 %v525, %v525
        %v542 = vsel %vm444, %v526, 0.0
        %543 = vadd.xlane.f32.xlu0 %v542
        %v544 = vpop.xlane.xlu0 %543
        %v545 = vsel %vm444, %v527, 0.0
        %546 = vadd.xlane.f32.xlu0 %v545
        %v547 = vpop.xlane.xlu0 %546
        %v548 = vsel %vm444, %v528, 0.0
        %549 = vadd.xlane.f32.xlu0 %v548
        %v550 = vpop.xlane.xlu0 %549
        %v551 = vsel %vm444, %v529, 0.0
        %552 = vadd.xlane.f32.xlu0 %v551
        %v553 = vpop.xlane.xlu0 %552
        %v554 = vsel %vm444, %v530, 0.0
        %555 = vadd.xlane.f32.xlu0 %v554
        %v556 = vpop.xlane.xlu0 %555
        %v557 = vsel %vm444, %v531, 0.0
        %558 = vadd.xlane.f32.xlu0 %v557
        %v559 = vpop.xlane.xlu0 %558
        %v560 = vsel %vm444, %v532, 0.0
        %561 = vadd.xlane.f32.xlu0 %v560
        %v562 = vpop.xlane.xlu0 %561
        %v563 = vsel %vm444, %v533, 0.0
        %564 = vadd.xlane.f32.xlu0 %v563
        %v565 = vpop.xlane.xlu0 %564
        %v566 = vsel %vm444, %v534, 0.0
        %567 = vadd.xlane.f32.xlu0 %v566
        %v568 = vpop.xlane.xlu0 %567
        %v569 = vsel %vm444, %v535, 0.0
        %570 = vadd.xlane.f32.xlu0 %v569
        %v571 = vpop.xlane.xlu0 %570
        %v572 = vsel %vm444, %v536, 0.0
        %573 = vadd.xlane.f32.xlu0 %v572
        %v574 = vpop.xlane.xlu0 %573
        %v575 = vsel %vm444, %v537, 0.0
        %576 = vadd.xlane.f32.xlu0 %v575
        %v577 = vpop.xlane.xlu0 %576
        %v578 = vsel %vm444, %v538, 0.0
        %579 = vadd.xlane.f32.xlu0 %v578
        %v580 = vpop.xlane.xlu0 %579
        %v581 = vsel %vm444, %v539, 0.0
        %582 = vadd.xlane.f32.xlu0 %v581
        %v583 = vpop.xlane.xlu0 %582
        %v584 = vsel %vm444, %v540, 0.0
        %585 = vadd.xlane.f32.xlu0 %v584
        %v586 = vpop.xlane.xlu0 %585
        %v587 = vsel %vm444, %v541, 0.0
        %588 = vadd.xlane.f32.xlu0 %v587
        %v589 = vpop.xlane.xlu0 %588
        %v590 = vmul.f32 %v544, %v493
        %v591 = vmul.f32 %v547, %v493
        %v592 = vmul.f32 %v550, %v493
        %v593 = vmul.f32 %v553, %v493
        %v594 = vmul.f32 %v556, %v493
        %v595 = vmul.f32 %v559, %v493
        %v596 = vmul.f32 %v562, %v493
        %v597 = vmul.f32 %v565, %v493
        %v598 = vmul.f32 %v568, %v493
        %v599 = vmul.f32 %v571, %v493
        %v600 = vmul.f32 %v574, %v493
        %v601 = vmul.f32 %v577, %v493
        %v602 = vmul.f32 %v580, %v493
        %v603 = vmul.f32 %v583, %v493
        %v604 = vmul.f32 %v586, %v493
        %v605 = vmul.f32 %v589, %v493
        %v606 = vadd.f32 %v590, 1e-06
        %v607 = vadd.f32 %v591, 1e-06
        %v608 = vadd.f32 %v592, 1e-06
        %v609 = vadd.f32 %v593, 1e-06
        %v610 = vadd.f32 %v594, 1e-06
        %v611 = vadd.f32 %v595, 1e-06
        %v612 = vadd.f32 %v596, 1e-06
        %v613 = vadd.f32 %v597, 1e-06
        %v614 = vadd.f32 %v598, 1e-06
        %v615 = vadd.f32 %v599, 1e-06
        %v616 = vadd.f32 %v600, 1e-06
        %v617 = vadd.f32 %v601, 1e-06
        %v618 = vadd.f32 %v602, 1e-06
        %v619 = vadd.f32 %v603, 1e-06
        %v620 = vadd.f32 %v604, 1e-06
        %v621 = vadd.f32 %v605, 1e-06
        %v622 = vrsqrt.pop %v606
        %v623 = vrsqrt.pop %v607
        %v624 = vrsqrt.pop %v608
        %v625 = vrsqrt.pop %v609
        %v626 = vrsqrt.pop %v610
        %v627 = vrsqrt.pop %v611
        %v628 = vrsqrt.pop %v612
        %v629 = vrsqrt.pop %v613
        %v630 = vrsqrt.pop %v614
        %v631 = vrsqrt.pop %v615
        %v632 = vrsqrt.pop %v616
        %v633 = vrsqrt.pop %v617
        %v634 = vrsqrt.pop %v618
        %v635 = vrsqrt.pop %v619
        %v636 = vrsqrt.pop %v620
        %v637 = vrsqrt.pop %v621
        %v638 = vmul.f32 %v510, %v622
        %v639 = vmul.f32 %v511, %v623
        %v640 = vmul.f32 %v512, %v624
        %v641 = vmul.f32 %v513, %v625
        %v642 = vmul.f32 %v514, %v626
        %v643 = vmul.f32 %v515, %v627
        %v644 = vmul.f32 %v516, %v628
        %v645 = vmul.f32 %v517, %v629
        %v646 = vmul.f32 %v518, %v630
        %v647 = vmul.f32 %v519, %v631
        %v648 = vmul.f32 %v520, %v632
        %v649 = vmul.f32 %v521, %v633
        %v650 = vmul.f32 %v522, %v634
        %v651 = vmul.f32 %v523, %v635
        %v652 = vmul.f32 %v524, %v636
        %v653 = vmul.f32 %v525, %v637
        %v654 = vld [vmem:[%s2] sm:$0x1]
        %v656 = vlaneseq
        %v657 = vshrl.u32 %v656, 7
        %v658 = vsub.s32 0, %v657
        %v659 = vrot.slane %v654, %v658
        %v661 = vmul.f32 %v638, %v659
        %v662 = vmul.f32 %v639, %v659
        %v663 = vmul.f32 %v640, %v659
        %v664 = vmul.f32 %v641, %v659
        %v665 = vmul.f32 %v642, %v659
        %v666 = vmul.f32 %v643, %v659
        %v667 = vmul.f32 %v644, %v659
        %v668 = vmul.f32 %v645, %v659
        %v669 = vmul.f32 %v646, %v659
        %v670 = vmul.f32 %v647, %v659
        %v671 = vmul.f32 %v648, %v659
        %v672 = vmul.f32 %v649, %v659
        %v673 = vmul.f32 %v650, %v659
        %v674 = vmul.f32 %v651, %v659
        %v675 = vmul.f32 %v652, %v659
        %v676 = vmul.f32 %v653, %v659
        %v677 = vld [vmem:[%s3] sm:$0x1]
        %v679 = vlaneseq
        %v680 = vshrl.u32 %v679, 7
        %v681 = vsub.s32 0, %v680
        %v682 = vrot.slane %v677, %v681
        %v684 = vadd.f32 %v661, %v682
        %v685 = vadd.f32 %v662, %v682
        %v686 = vadd.f32 %v663, %v682
        %v687 = vadd.f32 %v664, %v682
        %v688 = vadd.f32 %v665, %v682
        %v689 = vadd.f32 %v666, %v682
        %v690 = vadd.f32 %v667, %v682
        %v691 = vadd.f32 %v668, %v682
        %v692 = vadd.f32 %v669, %v682
        %v693 = vadd.f32 %v670, %v682
        %v694 = vadd.f32 %v671, %v682
        %v695 = vadd.f32 %v672, %v682
        %v696 = vadd.f32 %v673, %v682
        %v697 = vadd.f32 %v674, %v682
        %v698 = vadd.f32 %v675, %v682
        %v699 = vadd.f32 %v676, %v682
        %v700 = vpack.c.bf16 %v685, %v684
        %v701 = vpack.c.bf16 %v687, %v686
        %v702 = vpack.c.bf16 %v689, %v688
        %v703 = vpack.c.bf16 %v691, %v690
        %v704 = vpack.c.bf16 %v693, %v692
        %v705 = vpack.c.bf16 %v695, %v694
        %v706 = vpack.c.bf16 %v697, %v696
        %v707 = vpack.c.bf16 %v699, %v698
        %v708 = vld [vmem:[%s4] sm:$0xf]
        %v709 = vld [vmem:[%s4 + $0x4] sm:$0xf]
        %v710 = vld [vmem:[%s4 + $0x8] sm:$0xf]
        %v711 = vld [vmem:[%s4 + $0xc] sm:$0xf]
        %v712 = vld [vmem:[%s5] sm:$0x1]
        %v714 = vlaneseq
        %v715 = vshrl.u32 %v714, 7
        %v716 = vsub.s32 0, %v715
        %v717 = vrot.slane %v712, %v716
        %v723 = vunpack.c.l.b16 %v708
        %v724 = vunpack.c.l.b16 %v709
        %v725 = vunpack.c.l.b16 %v710
        %v726 = vunpack.c.l.b16 %v711
        %v727 = vpack.c.b16 %v724, %v723
        %v728 = vpack.c.b16 %v726, %v725
        %v732 = vsel %vm444, %v700, 0
        %v735 = vsel %vm444, %v701, 0
        %v738 = vsel %vm444, %v702, 0
        %v741 = vsel %vm444, %v703, 0
        %v744 = vsel %vm444, %v704, 0
        %v747 = vsel %vm444, %v705, 0
        %v750 = vsel %vm444, %v706, 0
        %v753 = vsel %vm444, %v707, 0
        %755 = vmatprep.subr.bf16.mxu0 0
        %756 = vmatpush1.bf16.msra.mxu0 0
        %757 = vmatprep.subr.bf16.mxu0 0
        %758 = vmatpush1.bf16.msra.mxu0 0
        %759 = vmatprep.subr.bf16.mxu0 0
        %760 = vmatpush1.bf16.msra.mxu0 0
        %761 = vmatprep.subr.bf16.mxu0 0
        %762 = vmatpush1.bf16.msra.mxu0 0
        %763 = vmatprep.subr.bf16.mxu0 0
        %764 = vmatpush1.bf16.msra.mxu0 0
        %765 = vmatprep.subr.bf16.mxu0 0
        %766 = vmatpush1.bf16.msra.mxu0 0
        %767 = vmatprep.subr.bf16.mxu0 0
        %768 = vmatpush1.bf16.msra.mxu0 %v728
        %769 = vmatprep.subr.bf16.mxu0 0
        %770 = vmatpush1.bf16.msra.mxu0 %v727
        %771 = vmatprep.subr.bf16.mxu0 0
        %772 = vmatpush2.bf16.msra.mxu0 0
        %773 = vmatprep.subr.bf16.mxu0 0
        %774 = vmatpush2.bf16.msra.mxu0 0
        %775 = vmatprep.subr.bf16.mxu0 0
        %776 = vmatpush2.bf16.msra.mxu0 0
        %777 = vmatprep.subr.bf16.mxu0 0
        %778 = vmatpush2.bf16.msra.mxu0 0
        %779 = vmatprep.subr.bf16.mxu0 0
        %780 = vmatpush2.bf16.msra.mxu0 0
        %781 = vmatprep.subr.bf16.mxu0 0
        %782 = vmatpush2.bf16.msra.mxu0 0
        %783 = vmatprep.subr.bf16.mxu0 0
        %784 = vmatpush2.bf16.msra.mxu0 0
        %785 = vmatprep.subr.bf16.mxu0 0
        %786 = vmatpush2.bf16.msra.mxu0 0
        %787 = vmatprep.mubr.bf16.mxu0 0
        %788 = vmatmul.mubr.bf16.gmra.mxu0 %v732
        %v789 = vpop.f32.mrf.mxu0
        %v790 = vadd.f32 %v717, %v789
        %v791 = vpop.f32.mrf.mxu0
        %v792 = vpop.f32.mrf.mxu0
        %v793 = vadd.f32 %v717, %v792
        %v794 = vpop.f32.mrf.mxu0
        %795 = vmatprep.mubr.bf16.mxu0 0
        %796 = vmatmul.mubr.bf16.gmra.mxu0 %v735
        %v797 = vpop.f32.mrf.mxu0
        %v798 = vadd.f32 %v717, %v797
        %v799 = vpop.f32.mrf.mxu0
        %v800 = vpop.f32.mrf.mxu0
        %v801 = vadd.f32 %v717, %v800
        %v802 = vpop.f32.mrf.mxu0
        %803 = vmatprep.mubr.bf16.mxu0 0
        %804 = vmatmul.mubr.bf16.gmra.mxu0 %v738
        %v805 = vpop.f32.mrf.mxu0
        %v806 = vadd.f32 %v717, %v805
        %v807 = vpop.f32.mrf.mxu0
        %v808 = vpop.f32.mrf.mxu0
        %v809 = vadd.f32 %v717, %v808
        %v810 = vpop.f32.mrf.mxu0
        %811 = vmatprep.mubr.bf16.mxu0 0
        %812 = vmatmul.mubr.bf16.gmra.mxu0 %v741
        %v813 = vpop.f32.mrf.mxu0
        %v814 = vadd.f32 %v717, %v813
        %v815 = vpop.f32.mrf.mxu0
        %v816 = vpop.f32.mrf.mxu0
        %v817 = vadd.f32 %v717, %v816
        %v818 = vpop.f32.mrf.mxu0
        %819 = vmatprep.mubr.bf16.mxu0 0
        %820 = vmatmul.mubr.bf16.gmra.mxu0 %v744
        %v821 = vpop.f32.mrf.mxu0
        %v822 = vadd.f32 %v717, %v821
        %v823 = vpop.f32.mrf.mxu0
        %v824 = vpop.f32.mrf.mxu0
        %v825 = vadd.f32 %v717, %v824
        %v826 = vpop.f32.mrf.mxu0
        %827 = vmatprep.mubr.bf16.mxu0 0
        %828 = vmatmul.mubr.bf16.gmra.mxu0 %v747
        %v829 = vpop.f32.mrf.mxu0
        %v830 = vadd.f32 %v717, %v829
        %v831 = vpop.f32.mrf.mxu0
        %v832 = vpop.f32.mrf.mxu0
        %v833 = vadd.f32 %v717, %v832
        %v834 = vpop.f32.mrf.mxu0
        %835 = vmatprep.mubr.bf16.mxu0 0
        %836 = vmatmul.mubr.bf16.gmra.mxu0 %v750
        %v837 = vpop.f32.mrf.mxu0
        %v838 = vadd.f32 %v717, %v837
        %v839 = vpop.f32.mrf.mxu0
        %v840 = vpop.f32.mrf.mxu0
        %v841 = vadd.f32 %v717, %v840
        %v842 = vpop.f32.mrf.mxu0
        %843 = vmatprep.mubr.bf16.mxu0 0
        %844 = vmatmul.mubr.bf16.gmra.mxu0 %v753
        %v845 = vpop.f32.mrf.mxu0
        %v846 = vadd.f32 %v717, %v845
        %v847 = vpop.f32.mrf.mxu0
        %v848 = vpop.f32.mrf.mxu0
        %v849 = vadd.f32 %v717, %v848
        %v850 = vpop.f32.mrf.mxu0
        %851 = vdwg.mxu0
        %v852 = vmax.f32 %v790, 0.0
        %v853 = vmax.f32 %v793, 0.0
        %v854 = vmax.f32 %v798, 0.0
        %v855 = vmax.f32 %v801, 0.0
        %v856 = vmax.f32 %v806, 0.0
        %v857 = vmax.f32 %v809, 0.0
        %v858 = vmax.f32 %v814, 0.0
        %v859 = vmax.f32 %v817, 0.0
        %v860 = vmax.f32 %v822, 0.0
        %v861 = vmax.f32 %v825, 0.0
        %v862 = vmax.f32 %v830, 0.0
        %v863 = vmax.f32 %v833, 0.0
        %v864 = vmax.f32 %v838, 0.0
        %v865 = vmax.f32 %v841, 0.0
        %v866 = vmax.f32 %v846, 0.0
        %v867 = vmax.f32 %v849, 0.0
        %v868 = vpack.c.bf16 %v853, %v852
        %v869 = vpack.c.bf16 %v855, %v854
        %v870 = vpack.c.bf16 %v857, %v856
        %v871 = vpack.c.bf16 %v859, %v858
        %v872 = vpack.c.bf16 %v861, %v860
        %v873 = vpack.c.bf16 %v863, %v862
        %v874 = vpack.c.bf16 %v865, %v864
        %v875 = vpack.c.bf16 %v867, %v866
        %v876 = vld [vmem:[%s6] sm:$0xf]
        %v877 = vld [vmem:[%s6 + $0x4] sm:$0xf]
        %v878 = vld [vmem:[%s7] sm:$0x1]
        %v880 = vlaneseq
        %v881 = vshrl.u32 %v880, 7
        %v882 = vsub.s32 0, %v881
        %v883 = vrot.slane %v878, %v882
        %v887 = vunpack.c.l.b16 %v876
        %v888 = vunpack.c.l.b16 %v877
        %v889 = vpack.c.b16 %v888, %v887
        %vm891 = vcmask 130048
        %v893 = vsel %vm891, %v868, 0
        %v896 = vsel %vm891, %v869, 0
        %v899 = vsel %vm891, %v870, 0
        %v902 = vsel %vm891, %v871, 0
        %v905 = vsel %vm891, %v872, 0
        %v908 = vsel %vm891, %v873, 0
        %v911 = vsel %vm891, %v874, 0
        %v914 = vsel %vm891, %v875, 0
        %916 = vmatprep.subr.bf16.mxu0 0
        %917 = vmatpush1.bf16.msra.mxu0 0
        %918 = vmatprep.subr.bf16.mxu0 0
        %919 = vmatpush1.bf16.msra.mxu0 0
        %920 = vmatprep.subr.bf16.mxu0 0
        %921 = vmatpush1.bf16.msra.mxu0 0
        %922 = vmatprep.subr.bf16.mxu0 0
        %923 = vmatpush1.bf16.msra.mxu0 0
        %924 = vmatprep.subr.bf16.mxu0 0
        %925 = vmatpush1.bf16.msra.mxu0 0
        %926 = vmatprep.subr.bf16.mxu0 0
        %927 = vmatpush1.bf16.msra.mxu0 0
        %928 = vmatprep.subr.bf16.mxu0 0
        %929 = vmatpush1.bf16.msra.mxu0 0
        %930 = vmatprep.subr.bf16.mxu0 0
        %931 = vmatpush1.bf16.msra.mxu0 %v889
        %932 = vmatprep.subr.bf16.mxu0 0
        %933 = vmatpush2.bf16.msra.mxu0 0
        %934 = vmatprep.subr.bf16.mxu0 0
        %935 = vmatpush2.bf16.msra.mxu0 0
        %936 = vmatprep.subr.bf16.mxu0 0
        %937 = vmatpush2.bf16.msra.mxu0 0
        %938 = vmatprep.subr.bf16.mxu0 0
        %939 = vmatpush2.bf16.msra.mxu0 0
        %940 = vmatprep.subr.bf16.mxu0 0
        %941 = vmatpush2.bf16.msra.mxu0 0
        %942 = vmatprep.subr.bf16.mxu0 0
        %943 = vmatpush2.bf16.msra.mxu0 0
        %944 = vmatprep.subr.bf16.mxu0 0
        %945 = vmatpush2.bf16.msra.mxu0 0
        %946 = vmatprep.subr.bf16.mxu0 0
        %947 = vmatpush2.bf16.msra.mxu0 0
        %948 = vmatprep.mubr.bf16.mxu0 0
        %949 = vmatmul.mubr.bf16.gmra.mxu0 %v893
        %v950 = vpop.f32.mrf.mxu0
        %v951 = vadd.f32 %v883, %v950
        %v952 = vpop.f32.mrf.mxu0
        %v953 = vpop.f32.mrf.mxu0
        %v954 = vadd.f32 %v883, %v953
        %v955 = vpop.f32.mrf.mxu0
        %956 = vmatprep.mubr.bf16.mxu0 0
        %957 = vmatmul.mubr.bf16.gmra.mxu0 %v896
        %v958 = vpop.f32.mrf.mxu0
        %v959 = vadd.f32 %v883, %v958
        %v960 = vpop.f32.mrf.mxu0
        %v961 = vpop.f32.mrf.mxu0
        %v962 = vadd.f32 %v883, %v961
        %v963 = vpop.f32.mrf.mxu0
        %964 = vmatprep.mubr.bf16.mxu0 0
        %965 = vmatmul.mubr.bf16.gmra.mxu0 %v899
        %v966 = vpop.f32.mrf.mxu0
        %v967 = vadd.f32 %v883, %v966
        %v968 = vpop.f32.mrf.mxu0
        %v969 = vpop.f32.mrf.mxu0
        %v970 = vadd.f32 %v883, %v969
        %v971 = vpop.f32.mrf.mxu0
        %972 = vmatprep.mubr.bf16.mxu0 0
        %973 = vmatmul.mubr.bf16.gmra.mxu0 %v902
        %v974 = vpop.f32.mrf.mxu0
        %v975 = vadd.f32 %v883, %v974
        %v976 = vpop.f32.mrf.mxu0
        %v977 = vpop.f32.mrf.mxu0
        %v978 = vadd.f32 %v883, %v977
        %v979 = vpop.f32.mrf.mxu0
        %980 = vmatprep.mubr.bf16.mxu0 0
        %981 = vmatmul.mubr.bf16.gmra.mxu0 %v905
        %v982 = vpop.f32.mrf.mxu0
        %v983 = vadd.f32 %v883, %v982
        %v984 = vpop.f32.mrf.mxu0
        %v985 = vpop.f32.mrf.mxu0
        %v986 = vadd.f32 %v883, %v985
        %v987 = vpop.f32.mrf.mxu0
        %988 = vmatprep.mubr.bf16.mxu0 0
        %989 = vmatmul.mubr.bf16.gmra.mxu0 %v908
        %v990 = vpop.f32.mrf.mxu0
        %v991 = vadd.f32 %v883, %v990
        %v992 = vpop.f32.mrf.mxu0
        %v993 = vpop.f32.mrf.mxu0
        %v994 = vadd.f32 %v883, %v993
        %v995 = vpop.f32.mrf.mxu0
        %996 = vmatprep.mubr.bf16.mxu0 0
        %997 = vmatmul.mubr.bf16.gmra.mxu0 %v911
        %v998 = vpop.f32.mrf.mxu0
        %v999 = vadd.f32 %v883, %v998
        %v1000 = vpop.f32.mrf.mxu0
        %v1001 = vpop.f32.mrf.mxu0
        %v1002 = vadd.f32 %v883, %v1001
        %v1003 = vpop.f32.mrf.mxu0
        %1004 = vmatprep.mubr.bf16.mxu0 0
        %1005 = vmatmul.mubr.bf16.gmra.mxu0 %v914
        %v1006 = vpop.f32.mrf.mxu0
        %v1007 = vadd.f32 %v883, %v1006
        %v1008 = vpop.f32.mrf.mxu0
        %v1009 = vpop.f32.mrf.mxu0
        %v1010 = vadd.f32 %v883, %v1009
        %v1011 = vpop.f32.mrf.mxu0
        %1012 = vdwg.mxu0
        %v1013 = vmax.f32 %v951, 0.0
        %v1014 = vmax.f32 %v954, 0.0
        %v1015 = vmax.f32 %v959, 0.0
        %v1016 = vmax.f32 %v962, 0.0
        %v1017 = vmax.f32 %v967, 0.0
        %v1018 = vmax.f32 %v970, 0.0
        %v1019 = vmax.f32 %v975, 0.0
        %v1020 = vmax.f32 %v978, 0.0
        %v1021 = vmax.f32 %v983, 0.0
        %v1022 = vmax.f32 %v986, 0.0
        %v1023 = vmax.f32 %v991, 0.0
        %v1024 = vmax.f32 %v994, 0.0
        %v1025 = vmax.f32 %v999, 0.0
        %v1026 = vmax.f32 %v1002, 0.0
        %v1027 = vmax.f32 %v1007, 0.0
        %v1028 = vmax.f32 %v1010, 0.0
        %v1029 = vld [vmem:[%s8] sm:$0xff]
        %v1030 = vld [vmem:[%s8 + $0x8] sm:$0xff]
        %v1031 = vld [vmem:[%s9] sm:$0x1]
        %v1033 = vlaneseq
        %v1034 = vshrl.u32 %v1033, 7
        %v1035 = vsub.s32 0, %v1034
        %v1036 = vrot.slane %v1031, %v1035
        %v1039 = vsel %vm891, %v1013, 0
        %v1042 = vsel %vm891, %v1014, 0
        %v1045 = vsel %vm891, %v1015, 0
        %v1048 = vsel %vm891, %v1016, 0
        %v1051 = vsel %vm891, %v1017, 0
        %v1054 = vsel %vm891, %v1018, 0
        %v1057 = vsel %vm891, %v1019, 0
        %v1060 = vsel %vm891, %v1020, 0
        %v1063 = vsel %vm891, %v1021, 0
        %v1066 = vsel %vm891, %v1022, 0
        %v1069 = vsel %vm891, %v1023, 0
        %v1072 = vsel %vm891, %v1024, 0
        %v1075 = vsel %vm891, %v1025, 0
        %v1078 = vsel %vm891, %v1026, 0
        %v1081 = vsel %vm891, %v1027, 0
        %v1084 = vsel %vm891, %v1028, 0
        %1086 = vmatprep.subr.mxu0 0.0
        %1087 = vmatpush1.msra.mxu0 0.0
        %1088 = vmatprep.subr.mxu0 0.0
        %1089 = vmatpush1.msra.mxu0 0.0
        %1090 = vmatprep.subr.mxu0 0.0
        %1091 = vmatpush1.msra.mxu0 0.0
        %1092 = vmatprep.subr.mxu0 0.0
        %1093 = vmatpush1.msra.mxu0 0.0
        %1094 = vmatprep.subr.mxu0 0.0
        %1095 = vmatpush1.msra.mxu0 0.0
        %1096 = vmatprep.subr.mxu0 0.0
        %1097 = vmatpush1.msra.mxu0 0.0
        %1098 = vmatprep.subr.mxu0 0.0
        %1099 = vmatpush1.msra.mxu0 0.0
        %1100 = vmatprep.subr.mxu0 0.0
        %1101 = vmatpush1.msra.mxu0 0.0
        %1102 = vmatprep.subr.mxu0 0.0
        %1103 = vmatpush1.msra.mxu0 0.0
        %1104 = vmatprep.subr.mxu0 0.0
        %1105 = vmatpush1.msra.mxu0 0.0
        %1106 = vmatprep.subr.mxu0 0.0
        %1107 = vmatpush1.msra.mxu0 0.0
        %1108 = vmatprep.subr.mxu0 0.0
        %1109 = vmatpush1.msra.mxu0 0.0
        %1110 = vmatprep.subr.mxu0 0.0
        %1111 = vmatpush1.msra.mxu0 0.0
        %1112 = vmatprep.subr.mxu0 0.0
        %1113 = vmatpush1.msra.mxu0 0.0
        %1114 = vmatprep.subr.mxu0 0.0
        %1115 = vmatpush1.msra.mxu0 %v1030
        %1116 = vmatprep.subr.mxu0 0.0
        %1117 = vmatpush1.msra.mxu0 %v1029
        %1118 = vmatprep.subr.mxu0 0.0
        %1119 = vmatpush2.msra.mxu0 0.0
        %1120 = vmatprep.subr.mxu0 0.0
        %1121 = vmatpush2.msra.mxu0 0.0
        %1122 = vmatprep.subr.mxu0 0.0
        %1123 = vmatpush2.msra.mxu0 0.0
        %1124 = vmatprep.subr.mxu0 0.0
        %1125 = vmatpush2.msra.mxu0 0.0
        %1126 = vmatprep.subr.mxu0 0.0
        %1127 = vmatpush2.msra.mxu0 0.0
        %1128 = vmatprep.subr.mxu0 0.0
        %1129 = vmatpush2.msra.mxu0 0.0
        %1130 = vmatprep.subr.mxu0 0.0
        %1131 = vmatpush2.msra.mxu0 0.0
        %1132 = vmatprep.subr.mxu0 0.0
        %1133 = vmatpush2.msra.mxu0 0.0
        %1134 = vmatprep.subr.mxu0 0.0
        %1135 = vmatpush2.msra.mxu0 0.0
        %1136 = vmatprep.subr.mxu0 0.0
        %1137 = vmatpush2.msra.mxu0 0.0
        %1138 = vmatprep.subr.mxu0 0.0
        %1139 = vmatpush2.msra.mxu0 0.0
        %1140 = vmatprep.subr.mxu0 0.0
        %1141 = vmatpush2.msra.mxu0 0.0
        %1142 = vmatprep.subr.mxu0 0.0
        %1143 = vmatpush2.msra.mxu0 0.0
        %1144 = vmatprep.subr.mxu0 0.0
        %1145 = vmatpush2.msra.mxu0 0.0
        %1146 = vmatprep.subr.mxu0 0.0
        %1147 = vmatpush2.msra.mxu0 0.0
        %1148 = vmatprep.subr.mxu0 0.0
        %1149 = vmatpush2.msra.mxu0 0.0
        %1150 = vmatprep.mubr.f32.mxu0 0.0
        %1151 = vmatmul.mubr.f32.gmra.mxu0 %v1039
        %v1152 = vpop.f32.mrf.mxu0
        %v1153 = vadd.f32 %v1036, %v1152
        %v1154 = vpop.f32.mrf.mxu0
        %1155 = vmatprep.mubr.f32.mxu0 0.0
        %1156 = vmatmul.mubr.f32.gmra.mxu0 %v1042
        %v1157 = vpop.f32.mrf.mxu0
        %v1158 = vadd.f32 %v1036, %v1157
        %v1159 = vpop.f32.mrf.mxu0
        %1160 = vmatprep.mubr.f32.mxu0 0.0
        %1161 = vmatmul.mubr.f32.gmra.mxu0 %v1045
        %v1162 = vpop.f32.mrf.mxu0
        %v1163 = vadd.f32 %v1036, %v1162
        %v1164 = vpop.f32.mrf.mxu0
        %1165 = vmatprep.mubr.f32.mxu0 0.0
        %1166 = vmatmul.mubr.f32.gmra.mxu0 %v1048
        %v1167 = vpop.f32.mrf.mxu0
        %v1168 = vadd.f32 %v1036, %v1167
        %v1169 = vpop.f32.mrf.mxu0
        %1170 = vmatprep.mubr.f32.mxu0 0.0
        %1171 = vmatmul.mubr.f32.gmra.mxu0 %v1051
        %v1172 = vpop.f32.mrf.mxu0
        %v1173 = vadd.f32 %v1036, %v1172
        %v1174 = vpop.f32.mrf.mxu0
        %1175 = vmatprep.mubr.f32.mxu0 0.0
        %1176 = vmatmul.mubr.f32.gmra.mxu0 %v1054
        %v1177 = vpop.f32.mrf.mxu0
        %v1178 = vadd.f32 %v1036, %v1177
        %v1179 = vpop.f32.mrf.mxu0
        %1180 = vmatprep.mubr.f32.mxu0 0.0
        %1181 = vmatmul.mubr.f32.gmra.mxu0 %v1057
        %v1182 = vpop.f32.mrf.mxu0
        %v1183 = vadd.f32 %v1036, %v1182
        %v1184 = vpop.f32.mrf.mxu0
        %1185 = vmatprep.mubr.f32.mxu0 0.0
        %1186 = vmatmul.mubr.f32.gmra.mxu0 %v1060
        %v1187 = vpop.f32.mrf.mxu0
        %v1188 = vadd.f32 %v1036, %v1187
        %v1189 = vpop.f32.mrf.mxu0
        %1190 = vmatprep.mubr.f32.mxu0 0.0
        %1191 = vmatmul.mubr.f32.gmra.mxu0 %v1063
        %v1192 = vpop.f32.mrf.mxu0
        %v1193 = vadd.f32 %v1036, %v1192
        %v1194 = vpop.f32.mrf.mxu0
        %1195 = vmatprep.mubr.f32.mxu0 0.0
        %1196 = vmatmul.mubr.f32.gmra.mxu0 %v1066
        %v1197 = vpop.f32.mrf.mxu0
        %v1198 = vadd.f32 %v1036, %v1197
        %v1199 = vpop.f32.mrf.mxu0
        %1200 = vmatprep.mubr.f32.mxu0 0.0
        %1201 = vmatmul.mubr.f32.gmra.mxu0 %v1069
        %v1202 = vpop.f32.mrf.mxu0
        %v1203 = vadd.f32 %v1036, %v1202
        %v1204 = vpop.f32.mrf.mxu0
        %1205 = vmatprep.mubr.f32.mxu0 0.0
        %1206 = vmatmul.mubr.f32.gmra.mxu0 %v1072
        %v1207 = vpop.f32.mrf.mxu0
        %v1208 = vadd.f32 %v1036, %v1207
        %v1209 = vpop.f32.mrf.mxu0
        %1210 = vmatprep.mubr.f32.mxu0 0.0
        %1211 = vmatmul.mubr.f32.gmra.mxu0 %v1075
        %v1212 = vpop.f32.mrf.mxu0
        %v1213 = vadd.f32 %v1036, %v1212
        %v1214 = vpop.f32.mrf.mxu0
        %1215 = vmatprep.mubr.f32.mxu0 0.0
        %1216 = vmatmul.mubr.f32.gmra.mxu0 %v1078
        %v1217 = vpop.f32.mrf.mxu0
        %v1218 = vadd.f32 %v1036, %v1217
        %v1219 = vpop.f32.mrf.mxu0
        %1220 = vmatprep.mubr.f32.mxu0 0.0
        %1221 = vmatmul.mubr.f32.gmra.mxu0 %v1081
        %v1222 = vpop.f32.mrf.mxu0
        %v1223 = vadd.f32 %v1036, %v1222
        %v1224 = vpop.f32.mrf.mxu0
        %1225 = vmatprep.mubr.f32.mxu0 0.0
        %1226 = vmatmul.mubr.f32.gmra.mxu0 %v1084
        %v1227 = vpop.f32.mrf.mxu0
        %v1228 = vadd.f32 %v1036, %v1227
        %v1229 = vpop.f32.mrf.mxu0
        %1230 = vdwg.mxu0
        %1231 = vxpose.xlu0.b32.start [1/16] %v1153, 128
        %1232 = vxpose.xlu0.b32.cont [2/16] %v1158, 128
        %1233 = vxpose.xlu0.b32.cont [3/16] %v1163, 128
        %1234 = vxpose.xlu0.b32.cont [4/16] %v1168, 128
        %1235 = vxpose.xlu0.b32.cont [5/16] %v1173, 128
        %1236 = vxpose.xlu0.b32.cont [6/16] %v1178, 128
        %1237 = vxpose.xlu0.b32.cont [7/16] %v1183, 128
        %1238 = vxpose.xlu0.b32.cont [8/16] %v1188, 128
        %1239 = vxpose.xlu0.b32.cont [9/16] %v1193, 128
        %1240 = vxpose.xlu0.b32.cont [10/16] %v1198, 128
        %1241 = vxpose.xlu0.b32.cont [11/16] %v1203, 128
        %1242 = vxpose.xlu0.b32.cont [12/16] %v1208, 128
        %1243 = vxpose.xlu0.b32.cont [13/16] %v1213, 128
        %1244 = vxpose.xlu0.b32.cont [14/16] %v1218, 128
        %1245 = vxpose.xlu0.b32.cont [15/16] %v1223, 128
        %1246 = vxpose.xlu0.b32.end [16/16] %v1228, 128
        %v1247 = vpop.trf.xlu0
        %v1248 = vpop.trf.xlu0
        %v1249 = vpop.trf.xlu0
        %v1250 = vpop.trf.xlu0
        %v1251 = vpop.trf.xlu0
        %v1252 = vpop.trf.xlu0
        %v1253 = vpop.trf.xlu0
        %v1254 = vpop.trf.xlu0
        %v1255 = vpop.trf.xlu0
        %v1256 = vpop.trf.xlu0
        %v1257 = vpop.trf.xlu0
        %v1258 = vpop.trf.xlu0
        %v1259 = vpop.trf.xlu0
        %v1260 = vpop.trf.xlu0
        %v1261 = vpop.trf.xlu0
        %v1262 = vpop.trf.xlu0
        %1263 = vst [vmem:[%s378] sm:$0xff] %v1247
        %s1264 = sand.u32 %s266, 1
        %s1265 = scalar_lea.sflag [#allocation3], %s1264
        %s1266 = sand.u32 %s266, 1
        %s1267 = smul.addr %s1266, 8
        %s1268 = scalar_lea.vmem [#allocation2], %s1267
        // Predicated region
        $region61: #{tpu_custom_call.1} parent=59 // pred_check
          %p1269 = pneg %p276
        $region62: #{tpu_custom_call.1} parent=59 // pred_check_branch
          %1271 = sbr.rel (%p1269) target = $region64
        $region63: #{tpu_custom_call.1} parent=59 // pred_region
          %s1273 = ssub.s32 128, 128
          %1274 = vsyncadd %s1265, %s1273
          %s1275 = sadd.s32 %s28, %s29
          %s1276 = smul.addr %s1275, 128
          %s1277 = scalar_lea.hbm %s10, %s1276
          %s1279 = sshll.u32 %s1268, 4
          %s1280 = int_to_ptr.vmem [resolvable:$true] %s1279
          %1282 = dma.vmem_to_hbm [thread:$0]  %s1280, 128, %s1277, %s1265
        $region64: #{tpu_custom_call.1} parent=59 // pred_fallthru
          _
      $region60: #{tpu_custom_call.1} parent=5 // pred_fallthru
        _
      %p1283 = scmp.le.s32.totalorder 2, %s19
      // Predicated region
      $region65: #{tpu_custom_call.1} parent=5 // pred_check
        %p1284 = pneg %p1283
      $region66: #{tpu_custom_call.1} parent=5 // pred_check_branch
        %1286 = sbr.rel (%p1284) target = $region68
      $region67: #{tpu_custom_call.1} parent=5 // pred_region
        %s1287 = ssub.s32 %s19, 2
        // Predicated region
        $region69: #{tpu_custom_call.1} parent=67 // pred_check
          %p1288 = pneg %p282
        $region70: #{tpu_custom_call.1} parent=67 // pred_check_branch
          %1290 = sbr.rel (%p1288) target = $region72
        $region71: #{tpu_custom_call.1} parent=67 // pred_region
          %s1291 = sand.u32 %s267, 1
          %s1292 = scalar_lea.sflag [#allocation3], %s1291
          %s1293 = sand.u32 %s267, 1
          %s1294 = smul.addr %s1293, 8
          %s1295 = scalar_lea.vmem [#allocation2], %s1294
          %1296 = dma.done %s1292, 128
        $region72: #{tpu_custom_call.1} parent=67 // pred_fallthru
          _
      $region68: #{tpu_custom_call.1} parent=5 // pred_fallthru
        _
    $region6: #{tpu_custom_call.1} parent=1 // loop_footer
      %s23 = sadd.s32 1, %s19
    $region7: #{tpu_custom_call.1} parent=1 // loop_footer_branch
      %18 = sbr.rel target = $region3
    $region8: #{tpu_custom_call.1} parent=1 // loop_exit
      _
    %1297 = vsyncpa [#allocation3], 1
    %s1298 = scalar_lea.sflag [#allocation3], 1
    %1299 = vsyncpa %s1298, 1

// kernel: tpu_custom_call.1
$region0: #{tpu_custom_call.1}
  #allocation0 [shape = 'u32[]', space=smem, size = 0x4, offset = 0x4, fixed_abs, tag = 'smem constant byte address 0x4 - core index']
  #allocation1 [shape = 'u32[144,128]{1,0:T(1,128)}', space=vmem, size = 0x12000, scoped, tag = 'internal scratch']
  %s0 = inlined_call_operand.vmem [shape: f32[3,1,32], index: 0, kind: input, shape index: {}]
  %s1 = inlined_call_operand.vmem [shape: bf16[128,32], index: 1, kind: input, shape index: {}]
  %s2 = inlined_call_operand.vmem [shape: f32[1,32], index: 2, kind: input, shape index: {}]
  %s3 = inlined_call_operand.vmem [shape: f32[1,32], index: 3, kind: input, shape index: {}]
  %s4 = inlined_call_operand.vmem [shape: bf16[32,16], index: 4, kind: input, shape index: {}]
  %s5 = inlined_call_operand.vmem [shape: f32[1,16], index: 5, kind: input, shape index: {}]
  %s6 = inlined_call_operand.vmem [shape: bf16[16,16], index: 6, kind: input, shape index: {}]
  %s7 = inlined_call_operand.vmem [shape: f32[1,16], index: 7, kind: input, shape index: {}]
  %s8 = inlined_call_operand.vmem [shape: f32[16,8], index: 8, kind: input, shape index: {}]
  %s9 = inlined_call_operand.vmem [shape: f32[1,8], index: 9, kind: input, shape index: {}]
  %s10 = inlined_call_operand.hbm [shape: f32[3,8,128], index: 10, kind: output, shape index: {}]
  %s11 = sld [smem:[#allocation0]]
  $region73: #{tpu_custom_call.1} parent=0
    _
  %s13 = ssub.s32 1, %s11
  %s14 = scalar_select 0, %s13, %s11
  $region1: #{tpu_custom_call.1} parent=0
    #allocation2 [shape = 'u8[8192]{0}', space=vmem, size = 0x2000, scoped, tag = 'output window, operand 0']
    #allocation3 [shape = 's32[2]{0}', space=sflag, size = 0x8, scoped, tag = 'scoped memory for tpu_custom_call.1']
    %15 = vsyncpa [#allocation3], 0
    %s16 = scalar_lea.sflag [#allocation3], 1
    %17 = vsyncpa %s16, 0
    loop: start=0, step=1, limit=5
    $region2: #{tpu_custom_call.1} parent=1 // loop_pre_header
      _
    $region3: #{tpu_custom_call.1} parent=1 // loop_header
      %s19 = sphi 0, %s23
      %p20 = scmp.ge.s32.totalorder %s19, 5
      %s26 = sphi 0, %s38
      %s27 = sphi 0, %s34
      %s28 = sphi 0, %s26
      %s29 = sphi 0, %s27
      %s30 = sphi 0, %s28
      %s31 = sphi 0, %s29
      %s41 = sphi 0, %s43
      %s44 = sphi 0, %s41
      %s45 = sphi 0, %s44
      %s61 = sphi 0, %s45
      %s67 = sphi 0, %s69
      %s70 = sphi 0, %s67
      %s71 = sphi 0, %s70
      %s87 = sphi 0, %s71
      %s91 = sphi 0, %s91
      %s93 = sphi 0, %s91
      %s94 = sphi 0, %s93
      %s108 = sphi 0, %s94
      %s112 = sphi 0, %s112
      %s114 = sphi 0, %s112
      %s115 = sphi 0, %s114
      %s129 = sphi 0, %s115
      %s133 = sphi 0, %s133
      %s135 = sphi 0, %s133
      %s136 = sphi 0, %s135
      %s150 = sphi 0, %s136
      %s154 = sphi 0, %s154
      %s156 = sphi 0, %s154
      %s157 = sphi 0, %s156
      %s171 = sphi 0, %s157
      %s175 = sphi 0, %s175
      %s177 = sphi 0, %s175
      %s178 = sphi 0, %s177
      %s192 = sphi 0, %s178
      %s196 = sphi 0, %s196
      %s198 = sphi 0, %s196
      %s199 = sphi 0, %s198
      %s213 = sphi 0, %s199
      %s217 = sphi 0, %s217
      %s219 = sphi 0, %s217
      %s220 = sphi 0, %s219
      %s234 = sphi 0, %s220
      %s238 = sphi 0, %s238
      %s240 = sphi 0, %s238
      %s241 = sphi 0, %s240
      %s255 = sphi 0, %s241
      %s263 = sphi 0, %s265
      %s266 = sphi 0, %s263
      %s267 = sphi 0, %s266
      %s283 = sphi 0, %s267
    $region4: #{tpu_custom_call.1} parent=1 // loop_header_branch
      %22 = sbr.rel (%p20) target = $region8
    $region5: #{tpu_custom_call.1} parent=1 // loop_body
      %s24 = ssub.s32 %s19, 1
      %s25 = ssub.s32 %s19, 2
      %s32 = sadd.s32 1, %s27
      %p33 = scmp.ge.s32.totalorder %s32, 3
      %s34 = scalar_select %p33, 0, %s32
      %s35 = sadd.s32 1, %s26
      %s36 = scalar_select %p33, %s35, %s26
      %p37 = scmp.ge.s32.totalorder %s36, 1
      %s38 = scalar_select %p37, 0, %s36
      %s39 = ssub.s32 %s27, %s34
      %p40 = scmp.eq.s32.totalorder %s39, 0
      %s42 = sadd.s32 %s41, 1
      %s43 = scalar_select %p40, %s41, %s42
      %p46 = pneg %p40
      %p47 = scmp.eq.s32.totalorder %s19, 2
      %p48 = por %p46, %p47
      %p49 = scmp.ne.s32.totalorder %s41, %s44
      %p50 = scmp.eq.s32.totalorder %s19, 0
      %p51 = por %p49, %p50
      %p52 = scmp.ne.s32.totalorder %s41, %s44
      %p53 = scmp.eq.s32.totalorder %s24, 2
      %p54 = por %p52, %p53
      %p55 = scmp.ne.s32.totalorder %s44, %s45
      %p56 = scmp.eq.s32.totalorder %s24, 0
      %p57 = por %p55, %p56
      %p58 = scmp.ne.s32.totalorder %s44, %s45
      %p59 = scmp.eq.s32.totalorder %s25, 2
      %p60 = por %p58, %p59
      %p62 = scmp.ne.s32.totalorder %s45, %s61
      %p63 = scmp.eq.s32.totalorder %s25, 0
      %p64 = por %p62, %p63
      %s65 = ssub.s32 %s26, %s38
      %p66 = scmp.eq.s32.totalorder %s65, 0
      %s68 = sadd.s32 %s67, 1
      %s69 = scalar_select %p66, %s67, %s68
      %p72 = pneg %p66
      %p73 = scmp.eq.s32.totalorder %s19, 2
      %p74 = por %p72, %p73
      %p75 = scmp.ne.s32.totalorder %s67, %s70
      %p76 = scmp.eq.s32.totalorder %s19, 0
      %p77 = por %p75, %p76
      %p78 = scmp.ne.s32.totalorder %s67, %s70
      %p79 = scmp.eq.s32.totalorder %s24, 2
      %p80 = por %p78, %p79
      %p81 = scmp.ne.s32.totalorder %s70, %s71
      %p82 = scmp.eq.s32.totalorder %s24, 0
      %p83 = por %p81, %p82
      %p84 = scmp.ne.s32.totalorder %s70, %s71
      %p85 = scmp.eq.s32.totalorder %s25, 2
      %p86 = por %p84, %p85
      %p88 = scmp.ne.s32.totalorder %s71, %s87
      %p89 = scmp.eq.s32.totalorder %s25, 0
      %p90 = por %p88, %p89
      %s92 = sadd.s32 %s91, 1
      %p95 = scmp.eq.s32.totalorder %s19, 2
      %p96 = scmp.ne.s32.totalorder %s91, %s93
      %p97 = scmp.eq.s32.totalorder %s19, 0
      %p98 = por %p96, %p97
      %p99 = scmp.ne.s32.totalorder %s91, %s93
      %p100 = scmp.eq.s32.totalorder %s24, 2
      %p101 = por %p99, %p100
      %p102 = scmp.ne.s32.totalorder %s93, %s94
      %p103 = scmp.eq.s32.totalorder %s24, 0
      %p104 = por %p102, %p103
      %p105 = scmp.ne.s32.totalorder %s93, %s94
      %p106 = scmp.eq.s32.totalorder %s25, 2
      %p107 = por %p105, %p106
      %p109 = scmp.ne.s32.totalorder %s94, %s108
      %p110 = scmp.eq.s32.totalorder %s25, 0
      %p111 = por %p109, %p110
      %s113 = sadd.s32 %s112, 1
      %p116 = scmp.eq.s32.totalorder %s19, 2
      %p117 = scmp.ne.s32.totalorder %s112, %s114
      %p118 = scmp.eq.s32.totalorder %s19, 0
      %p119 = por %p117, %p118
      %p120 = scmp.ne.s32.totalorder %s112, %s114
      %p121 = scmp.eq.s32.totalorder %s24, 2
      %p122 = por %p120, %p121
      %p123 = scmp.ne.s32.totalorder %s114, %s115
      %p124 = scmp.eq.s32.totalorder %s24, 0
      %p125 = por %p123, %p124
      %p126 = scmp.ne.s32.totalorder %s114, %s115
      %p127 = scmp.eq.s32.totalorder %s25, 2
      %p128 = por %p126, %p127
      %p130 = scmp.ne.s32.totalorder %s115, %s129
      %p131 = scmp.eq.s32.totalorder %s25, 0
      %p132 = por %p130, %p131
      %s134 = sadd.s32 %s133, 1
      %p137 = scmp.eq.s32.totalorder %s19, 2
      %p138 = scmp.ne.s32.totalorder %s133, %s135
      %p139 = scmp.eq.s32.totalorder %s19, 0
      %p140 = por %p138, %p139
      %p141 = scmp.ne.s32.totalorder %s133, %s135
      %p142 = scmp.eq.s32.totalorder %s24, 2
      %p143 = por %p141, %p142
      %p144 = scmp.ne.s32.totalorder %s135, %s136
      %p145 = scmp.eq.s32.totalorder %s24, 0
      %p146 = por %p144, %p145
      %p147 = scmp.ne.s32.totalorder %s135, %s136
      %p148 = scmp.eq.s32.totalorder %s25, 2
      %p149 = por %p147, %p148
      %p151 = scmp.ne.s32.totalorder %s136, %s150
      %p152 = scmp.eq.s32.totalorder %s25, 0
      %p153 = por %p151, %p152
      %s155 = sadd.s32 %s154, 1
      %p158 = scmp.eq.s32.totalorder %s19, 2
      %p159 = scmp.ne.s32.totalorder %s154, %s156
      %p160 = scmp.eq.s32.totalorder %s19, 0
      %p161 = por %p159, %p160
      %p162 = scmp.ne.s32.totalorder %s154, %s156
      %p163 = scmp.eq.s32.totalorder %s24, 2
      %p164 = por %p162, %p163
      %p165 = scmp.ne.s32.totalorder %s156, %s157
      %p166 = scmp.eq.s32.totalorder %s24, 0
      %p167 = por %p165, %p166
      %p168 = scmp.ne.s32.totalorder %s156, %s157
      %p169 = scmp.eq.s32.totalorder %s25, 2
      %p170 = por %p168, %p169
      %p172 = scmp.ne.s32.totalorder %s157, %s171
      %p173 = scmp.eq.s32.totalorder %s25, 0
      %p174 = por %p172, %p173
      %s176 = sadd.s32 %s175, 1
      %p179 = scmp.eq.s32.totalorder %s19, 2
      %p180 = scmp.ne.s32.totalorder %s175, %s177
      %p181 = scmp.eq.s32.totalorder %s19, 0
      %p182 = por %p180, %p181
      %p183 = scmp.ne.s32.totalorder %s175, %s177
      %p184 = scmp.eq.s32.totalorder %s24, 2
      %p185 = por %p183, %p184
      %p186 = scmp.ne.s32.totalorder %s177, %s178
      %p187 = scmp.eq.s32.totalorder %s24, 0
      %p188 = por %p186, %p187
      %p189 = scmp.ne.s32.totalorder %s177, %s178
      %p190 = scmp.eq.s32.totalorder %s25, 2
      %p191 = por %p189, %p190
      %p193 = scmp.ne.s32.totalorder %s178, %s192
      %p194 = scmp.eq.s32.totalorder %s25, 0
      %p195 = por %p193, %p194
      %s197 = sadd.s32 %s196, 1
      %p200 = scmp.eq.s32.totalorder %s19, 2
      %p201 = scmp.ne.s32.totalorder %s196, %s198
      %p202 = scmp.eq.s32.totalorder %s19, 0
      %p203 = por %p201, %p202
      %p204 = scmp.ne.s32.totalorder %s196, %s198
      %p205 = scmp.eq.s32.totalorder %s24, 2
      %p206 = por %p204, %p205
      %p207 = scmp.ne.s32.totalorder %s198, %s199
      %p208 = scmp.eq.s32.totalorder %s24, 0
      %p209 = por %p207, %p208
      %p210 = scmp.ne.s32.totalorder %s198, %s199
      %p211 = scmp.eq.s32.totalorder %s25, 2
      %p212 = por %p210, %p211
      %p214 = scmp.ne.s32.totalorder %s199, %s213
      %p215 = scmp.eq.s32.totalorder %s25, 0
      %p216 = por %p214, %p215
      %s218 = sadd.s32 %s217, 1
      %p221 = scmp.eq.s32.totalorder %s19, 2
      %p222 = scmp.ne.s32.totalorder %s217, %s219
      %p223 = scmp.eq.s32.totalorder %s19, 0
      %p224 = por %p222, %p223
      %p225 = scmp.ne.s32.totalorder %s217, %s219
      %p226 = scmp.eq.s32.totalorder %s24, 2
      %p227 = por %p225, %p226
      %p228 = scmp.ne.s32.totalorder %s219, %s220
      %p229 = scmp.eq.s32.totalorder %s24, 0
      %p230 = por %p228, %p229
      %p231 = scmp.ne.s32.totalorder %s219, %s220
      %p232 = scmp.eq.s32.totalorder %s25, 2
      %p233 = por %p231, %p232
      %p235 = scmp.ne.s32.totalorder %s220, %s234
      %p236 = scmp.eq.s32.totalorder %s25, 0
      %p237 = por %p235, %p236
      %s239 = sadd.s32 %s238, 1
      %p242 = scmp.eq.s32.totalorder %s19, 2
      %p243 = scmp.ne.s32.totalorder %s238, %s240
      %p244 = scmp.eq.s32.totalorder %s19, 0
      %p245 = por %p243, %p244
      %p246 = scmp.ne.s32.totalorder %s238, %s240
      %p247 = scmp.eq.s32.totalorder %s24, 2
      %p248 = por %p246, %p247
      %p249 = scmp.ne.s32.totalorder %s240, %s241
      %p250 = scmp.eq.s32.totalorder %s24, 0
      %p251 = por %p249, %p250
      %p252 = scmp.ne.s32.totalorder %s240, %s241
      %p253 = scmp.eq.s32.totalorder %s25, 2
      %p254 = por %p252, %p253
      %p256 = scmp.ne.s32.totalorder %s241, %s255
      %p257 = scmp.eq.s32.totalorder %s25, 0
      %p258 = por %p256, %p257
      %s259 = ssub.s32 %s27, %s34
      %s260 = ssub.s32 %s26, %s38
      %s261 = sor.u32 %s259, %s260
      %p262 = scmp.eq.s32.totalorder %s261, 0
      %s264 = sadd.s32 %s263, 1
      %s265 = scalar_select %p262, %s263, %s264
      %p268 = pneg %p262
      %p269 = scmp.eq.s32.totalorder %s19, 2
      %p270 = por %p268, %p269
      %p271 = scmp.ne.s32.totalorder %s263, %s266
      %p272 = scmp.eq.s32.totalorder %s19, 0
      %p273 = por %p271, %p272
      %p274 = scmp.ne.s32.totalorder %s263, %s266
      %p275 = scmp.eq.s32.totalorder %s24, 2
      %p276 = por %p274, %p275
      %p277 = scmp.ne.s32.totalorder %s266, %s267
      %p278 = scmp.eq.s32.totalorder %s24, 0
      %p279 = por %p277, %p278
      %p280 = scmp.ne.s32.totalorder %s266, %s267
      %p281 = scmp.eq.s32.totalorder %s25, 2
      %p282 = por %p280, %p281
      %p284 = scmp.ne.s32.totalorder %s267, %s283
      %p285 = scmp.eq.s32.totalorder %s25, 0
      %p286 = por %p284, %p285
      %p287 = scmp.le.s32.totalorder 1, %s19
      %p288 = scmp.lt.s32.totalorder %s19, 4
      %p289 = pnand %p287, %p288
      %p290 = pneg %p289
      // Predicated region
      $region9: #{tpu_custom_call.1} parent=5 // pred_check
        _
      $region10: #{tpu_custom_call.1} parent=5 // pred_check_branch
        %292 = sbr.rel (%p289) target = $region12
      $region11: #{tpu_custom_call.1} parent=5 // pred_region
        %s293 = ssub.s32 %s19, 1
        // Predicated region
        $region13: #{tpu_custom_call.1} parent=11 // pred_check
          %p294 = pneg %p83
        $region14: #{tpu_custom_call.1} parent=11 // pred_check_branch
          %296 = sbr.rel (%p294) target = $region16
        $region15: #{tpu_custom_call.1} parent=11 // pred_region
          %s297 = smul.u32 16, %s28
          %p298 = scmp.lt.s32.totalorder %s297, 15
          %s299 = scalar_select %p298, %s297, 15
          %s300 = smul.addr %s299, 4
          %s301 = scalar_lea.vmem %s1, %s300
          %s302 = smul.u32 16, %s28
        $region16: #{tpu_custom_call.1} parent=11 // pred_fallthru
          _
        // Predicated region
        $region17: #{tpu_custom_call.1} parent=11 // pred_check
          %p303 = pneg %p104
        $region18: #{tpu_custom_call.1} parent=11 // pred_check_branch
          %305 = sbr.rel (%p303) target = $region20
        $region19: #{tpu_custom_call.1} parent=11 // pred_region
          _
        $region20: #{tpu_custom_call.1} parent=11 // pred_fallthru
          _
        // Predicated region
        $region21: #{tpu_custom_call.1} parent=11 // pred_check
          %p306 = pneg %p125
        $region22: #{tpu_custom_call.1} parent=11 // pred_check_branch
          %308 = sbr.rel (%p306) target = $region24
        $region23: #{tpu_custom_call.1} parent=11 // pred_region
          _
        $region24: #{tpu_custom_call.1} parent=11 // pred_fallthru
          _
        // Predicated region
        $region25: #{tpu_custom_call.1} parent=11 // pred_check
          %p309 = pneg %p146
        $region26: #{tpu_custom_call.1} parent=11 // pred_check_branch
          %311 = sbr.rel (%p309) target = $region28
        $region27: #{tpu_custom_call.1} parent=11 // pred_region
          _
        $region28: #{tpu_custom_call.1} parent=11 // pred_fallthru
          _
        // Predicated region
        $region29: #{tpu_custom_call.1} parent=11 // pred_check
          %p312 = pneg %p167
        $region30: #{tpu_custom_call.1} parent=11 // pred_check_branch
          %314 = sbr.rel (%p312) target = $region32
        $region31: #{tpu_custom_call.1} parent=11 // pred_region
          _
        $region32: #{tpu_custom_call.1} parent=11 // pred_fallthru
          _
        // Predicated region
        $region33: #{tpu_custom_call.1} parent=11 // pred_check
          %p315 = pneg %p188
        $region34: #{tpu_custom_call.1} parent=11 // pred_check_branch
          %317 = sbr.rel (%p315) target = $region36
        $region35: #{tpu_custom_call.1} parent=11 // pred_region
          _
        $region36: #{tpu_custom_call.1} parent=11 // pred_fallthru
          _
        // Predicated region
        $region37: #{tpu_custom_call.1} parent=11 // pred_check
          %p318 = pneg %p209
        $region38: #{tpu_custom_call.1} parent=11 // pred_check_branch
          %320 = sbr.rel (%p318) target = $region40
        $region39: #{tpu_custom_call.1} parent=11 // pred_region
          _
        $region40: #{tpu_custom_call.1} parent=11 // pred_fallthru
          _
        // Predicated region
        $region41: #{tpu_custom_call.1} parent=11 // pred_check
          %p321 = pneg %p230
        $region42: #{tpu_custom_call.1} parent=11 // pred_check_branch
          %323 = sbr.rel (%p321) target = $region44
        $region43: #{tpu_custom_call.1} parent=11 // pred_region
          _
        $region44: #{tpu_custom_call.1} parent=11 // pred_fallthru
          _
        // Predicated region
        $region45: #{tpu_custom_call.1} parent=11 // pred_check
          %p324 = pneg %p251
        $region46: #{tpu_custom_call.1} parent=11 // pred_check_branch
          %326 = sbr.rel (%p324) target = $region48
        $region47: #{tpu_custom_call.1} parent=11 // pred_region
          _
        $region48: #{tpu_custom_call.1} parent=11 // pred_fallthru
          _
      $region12: #{tpu_custom_call.1} parent=5 // pred_fallthru
        _
      %p327 = scmp.lt.s32.totalorder %s19, 3
      // Predicated region
      $region49: #{tpu_custom_call.1} parent=5 // pred_check
        %p328 = pneg %p327
      $region50: #{tpu_custom_call.1} parent=5 // pred_check_branch
        %330 = sbr.rel (%p328) target = $region52
      $region51: #{tpu_custom_call.1} parent=5 // pred_region
        // Predicated region
        $region53: #{tpu_custom_call.1} parent=51 // pred_check
          %p331 = pneg %p51
        $region54: #{tpu_custom_call.1} parent=51 // pred_check_branch
          %333 = sbr.rel (%p331) target = $region56
        $region55: #{tpu_custom_call.1} parent=51 // pred_region
          %p334 = scmp.lt.s32.totalorder %s27, 2
          %s335 = scalar_select %p334, %s27, 2
          %s336 = scalar_lea.vmem %s0, %s335
        $region56: #{tpu_custom_call.1} parent=51 // pred_fallthru
          _
      $region52: #{tpu_custom_call.1} parent=5 // pred_fallthru
        _
      %p337 = scmp.le.s32.totalorder 1, %s19
      %p338 = scmp.lt.s32.totalorder %s19, 4
      %p339 = pnand %p337, %p338
      %p340 = pneg %p339
      // Predicated region
      $region57: #{tpu_custom_call.1} parent=5 // pred_check
        _
      $region58: #{tpu_custom_call.1} parent=5 // pred_check_branch
        %342 = sbr.rel (%p339) target = $region60
      $region59: #{tpu_custom_call.1} parent=5 // pred_region
        %s343 = ssub.s32 %s19, 1
        %p344 = scmp.lt.s32.totalorder %s29, 2
        %s345 = scalar_select %p344, %s29, 2
        %s346 = scalar_lea.vmem %s0, %s345
        %p347 = pneg %p57
        %p348 = pneg %p54
        %s349 = smul.u32 16, %s28
        %p350 = scmp.lt.s32.totalorder %s349, 15
        %s351 = scalar_select %p350, %s349, 15
        %s352 = smul.addr %s351, 4
        %s353 = scalar_lea.vmem %s1, %s352
        %p354 = pneg %p83
        %p355 = pneg %p80
        %p356 = pneg %p104
        %p357 = pneg %p101
        %p358 = pneg %p125
        %p359 = pneg %p122
        %p360 = pneg %p146
        %p361 = pneg %p143
        %p362 = pneg %p167
        %p363 = pneg %p164
        %p364 = pneg %p188
        %p365 = pneg %p185
        %p366 = pneg %p209
        %p367 = pneg %p206
        %p368 = pneg %p230
        %p369 = pneg %p227
        %p370 = pneg %p251
        %p371 = pneg %p248
        %p372 = pneg %p279
        %p373 = pneg %p276
        %s374 = sand.u32 %s266, 1
        %s375 = scalar_lea.sflag [#allocation3], %s374
        %s376 = sand.u32 %s266, 1
        %s377 = smul.addr %s376, 8
        %s378 = scalar_lea.vmem [#allocation2], %s377
        %p379 = scmp.lt.s32.totalorder %s29, 2
        %s380 = scalar_select %p379, %s29, 2
        %s381 = scalar_lea.vmem %s0, %s380
        %s382 = smul.u32 16, %s28
        %p383 = scmp.lt.s32.totalorder %s382, 15
        %s384 = scalar_select %p383, %s382, 15
        %s385 = smul.addr %s384, 4
        %s386 = scalar_lea.vmem %s1, %s385
        %s387 = smul.u32 16, %s28
        %v389 = vld [vmem:[%s386] sm:$0xf]
        %v390 = vld [vmem:[%s386 + $0x4] sm:$0xf]
        %v391 = vld [vmem:[%s386 + $0x8] sm:$0xf]
        %v392 = vld [vmem:[%s386 + $0xc] sm:$0xf]
        %v393 = vld [vmem:[%s386 + $0x10] sm:$0xf]
        %v394 = vld [vmem:[%s386 + $0x14] sm:$0xf]
        %v395 = vld [vmem:[%s386 + $0x18] sm:$0xf]
        %v396 = vld [vmem:[%s386 + $0x1c] sm:$0xf]
        %v397 = vld [vmem:[%s386 + $0x20] sm:$0xf]
        %v398 = vld [vmem:[%s386 + $0x24] sm:$0xf]
        %v399 = vld [vmem:[%s386 + $0x28] sm:$0xf]
        %v400 = vld [vmem:[%s386 + $0x2c] sm:$0xf]
        %v401 = vld [vmem:[%s386 + $0x30] sm:$0xf]
        %v402 = vld [vmem:[%s386 + $0x34] sm:$0xf]
        %v403 = vld [vmem:[%s386 + $0x38] sm:$0xf]
        %v404 = vld [vmem:[%s386 + $0x3c] sm:$0xf]
        %v405 = vunpack.c.l.bf16 %v389
        %v406 = vunpack.c.l.bf16 %v390
        %v407 = vunpack.c.l.bf16 %v391
        %v408 = vunpack.c.l.bf16 %v392
        %v409 = vunpack.c.l.bf16 %v393
        %v410 = vunpack.c.l.bf16 %v394
        %v411 = vunpack.c.l.bf16 %v395
        %v412 = vunpack.c.l.bf16 %v396
        %v413 = vunpack.c.l.bf16 %v397
        %v414 = vunpack.c.l.bf16 %v398
        %v415 = vunpack.c.l.bf16 %v399
        %v416 = vunpack.c.l.bf16 %v400
        %v417 = vunpack.c.l.bf16 %v401
        %v418 = vunpack.c.l.bf16 %v402
        %v419 = vunpack.c.l.bf16 %v403
        %v420 = vunpack.c.l.bf16 %v404
        %v421 = vld [vmem:[%s381] sm:$0x1]
        %v423 = vlaneseq
        %v424 = vshrl.u32 %v423, 7
        %v425 = vsub.s32 0, %v424
        %v426 = vrot.slane %v421, %v425
        %v428 = vadd.f32 %v405, %v426
        %v429 = vadd.f32 %v406, %v426
        %v430 = vadd.f32 %v407, %v426
        %v431 = vadd.f32 %v408, %v426
        %v432 = vadd.f32 %v409, %v426
        %v433 = vadd.f32 %v410, %v426
        %v434 = vadd.f32 %v411, %v426
        %v435 = vadd.f32 %v412, %v426
        %v436 = vadd.f32 %v413, %v426
        %v437 = vadd.f32 %v414, %v426
        %v438 = vadd.f32 %v415, %v426
        %v439 = vadd.f32 %v416, %v426
        %v440 = vadd.f32 %v417, %v426
        %v441 = vadd.f32 %v418, %v426
        %v442 = vadd.f32 %v419, %v426
        %v443 = vadd.f32 %v420, %v426
        %vm444 = vcmask 261120
        %v445 = vsel %vm444, %v428, 0.0
        %446 = vadd.xlane.f32.xlu0 %v445
        %v447 = vpop.xlane.xlu0 %446
        %v448 = vsel %vm444, %v429, 0.0
        %449 = vadd.xlane.f32.xlu0 %v448
        %v450 = vpop.xlane.xlu0 %449
        %v451 = vsel %vm444, %v430, 0.0
        %452 = vadd.xlane.f32.xlu0 %v451
        %v453 = vpop.xlane.xlu0 %452
        %v454 = vsel %vm444, %v431, 0.0
        %455 = vadd.xlane.f32.xlu0 %v454
        %v456 = vpop.xlane.xlu0 %455
        %v457 = vsel %vm444, %v432, 0.0
        %458 = vadd.xlane.f32.xlu0 %v457
        %v459 = vpop.xlane.xlu0 %458
        %v460 = vsel %vm444, %v433, 0.0
        %461 = vadd.xlane.f32.xlu0 %v460
        %v462 = vpop.xlane.xlu0 %461
        %v463 = vsel %vm444, %v434, 0.0
        %464 = vadd.xlane.f32.xlu0 %v463
        %v465 = vpop.xlane.xlu0 %464
        %v466 = vsel %vm444, %v435, 0.0
        %467 = vadd.xlane.f32.xlu0 %v466
        %v468 = vpop.xlane.xlu0 %467
        %v469 = vsel %vm444, %v436, 0.0
        %470 = vadd.xlane.f32.xlu0 %v469
        %v471 = vpop.xlane.xlu0 %470
        %v472 = vsel %vm444, %v437, 0.0
        %473 = vadd.xlane.f32.xlu0 %v472
        %v474 = vpop.xlane.xlu0 %473
        %v475 = vsel %vm444, %v438, 0.0
        %476 = vadd.xlane.f32.xlu0 %v475
        %v477 = vpop.xlane.xlu0 %476
        %v478 = vsel %vm444, %v439, 0.0
        %479 = vadd.xlane.f32.xlu0 %v478
        %v480 = vpop.xlane.xlu0 %479
        %v481 = vsel %vm444, %v440, 0.0
        %482 = vadd.xlane.f32.xlu0 %v481
        %v483 = vpop.xlane.xlu0 %482
        %v484 = vsel %vm444, %v441, 0.0
        %485 = vadd.xlane.f32.xlu0 %v484
        %v486 = vpop.xlane.xlu0 %485
        %v487 = vsel %vm444, %v442, 0.0
        %488 = vadd.xlane.f32.xlu0 %v487
        %v489 = vpop.xlane.xlu0 %488
        %v490 = vsel %vm444, %v443, 0.0
        %491 = vadd.xlane.f32.xlu0 %v490
        %v492 = vpop.xlane.xlu0 %491
        %v493 = vrcp.pop 32.0
        %v494 = vmul.f32 %v447, %v493
        %v495 = vmul.f32 %v450, %v493
        %v496 = vmul.f32 %v453, %v493
        %v497 = vmul.f32 %v456, %v493
        %v498 = vmul.f32 %v459, %v493
        %v499 = vmul.f32 %v462, %v493
        %v500 = vmul.f32 %v465, %v493
        %v501 = vmul.f32 %v468, %v493
        %v502 = vmul.f32 %v471, %v493
        %v503 = vmul.f32 %v474, %v493
        %v504 = vmul.f32 %v477, %v493
        %v505 = vmul.f32 %v480, %v493
        %v506 = vmul.f32 %v483, %v493
        %v507 = vmul.f32 %v486, %v493
        %v508 = vmul.f32 %v489, %v493
        %v509 = vmul.f32 %v492, %v493
        %v510 = vsub.f32 %v428, %v494
        %v511 = vsub.f32 %v429, %v495
        %v512 = vsub.f32 %v430, %v496
        %v513 = vsub.f32 %v431, %v497
        %v514 = vsub.f32 %v432, %v498
        %v515 = vsub.f32 %v433, %v499
        %v516 = vsub.f32 %v434, %v500
        %v517 = vsub.f32 %v435, %v501
        %v518 = vsub.f32 %v436, %v502
        %v519 = vsub.f32 %v437, %v503
        %v520 = vsub.f32 %v438, %v504
        %v521 = vsub.f32 %v439, %v505
        %v522 = vsub.f32 %v440, %v506
        %v523 = vsub.f32 %v441, %v507
        %v524 = vsub.f32 %v442, %v508
        %v525 = vsub.f32 %v443, %v509
        %v526 = vmul.f32 %v510, %v510
        %v527 = vmul.f32 %v511, %v511
        %v528 = vmul.f32 %v512, %v512
        %v529 = vmul.f32 %v513, %v513
        %v530 = vmul.f32 %v514, %v514
        %v531 = vmul.f32 %v515, %v515
        %v532 = vmul.f32 %v516, %v516
        %v533 = vmul.f32 %v517, %v517
        %v534 = vmul.f32 %v518, %v518
        %v535 = vmul.f32 %v519, %v519
        %v536 = vmul.f32 %v520, %v520
        %v537 = vmul.f32 %v521, %v521
        %v538 = vmul.f32 %v522, %v522
        %v539 = vmul.f32 %v523, %v523
        %v540 = vmul.f32 %v524, %v524
        %v541 = vmul.f32 %v525, %v525
        %v542 = vsel %vm444, %v526, 0.0
        %543 = vadd.xlane.f32.xlu0 %v542
        %v544 = vpop.xlane.xlu0 %543
        %v545 = vsel %vm444, %v527, 0.0
        %546 = vadd.xlane.f32.xlu0 %v545
        %v547 = vpop.xlane.xlu0 %546
        %v548 = vsel %vm444, %v528, 0.0
        %549 = vadd.xlane.f32.xlu0 %v548
        %v550 = vpop.xlane.xlu0 %549
        %v551 = vsel %vm444, %v529, 0.0
        %552 = vadd.xlane.f32.xlu0 %v551
        %v553 = vpop.xlane.xlu0 %552
        %v554 = vsel %vm444, %v530, 0.0
        %555 = vadd.xlane.f32.xlu0 %v554
        %v556 = vpop.xlane.xlu0 %555
        %v557 = vsel %vm444, %v531, 0.0
        %558 = vadd.xlane.f32.xlu0 %v557
        %v559 = vpop.xlane.xlu0 %558
        %v560 = vsel %vm444, %v532, 0.0
        %561 = vadd.xlane.f32.xlu0 %v560
        %v562 = vpop.xlane.xlu0 %561
        %v563 = vsel %vm444, %v533, 0.0
        %564 = vadd.xlane.f32.xlu0 %v563
        %v565 = vpop.xlane.xlu0 %564
        %v566 = vsel %vm444, %v534, 0.0
        %567 = vadd.xlane.f32.xlu0 %v566
        %v568 = vpop.xlane.xlu0 %567
        %v569 = vsel %vm444, %v535, 0.0
        %570 = vadd.xlane.f32.xlu0 %v569
        %v571 = vpop.xlane.xlu0 %570
        %v572 = vsel %vm444, %v536, 0.0
        %573 = vadd.xlane.f32.xlu0 %v572
        %v574 = vpop.xlane.xlu0 %573
        %v575 = vsel %vm444, %v537, 0.0
        %576 = vadd.xlane.f32.xlu0 %v575
        %v577 = vpop.xlane.xlu0 %576
        %v578 = vsel %vm444, %v538, 0.0
        %579 = vadd.xlane.f32.xlu0 %v578
        %v580 = vpop.xlane.xlu0 %579
        %v581 = vsel %vm444, %v539, 0.0
        %582 = vadd.xlane.f32.xlu0 %v581
        %v583 = vpop.xlane.xlu0 %582
        %v584 = vsel %vm444, %v540, 0.0
        %585 = vadd.xlane.f32.xlu0 %v584
        %v586 = vpop.xlane.xlu0 %585
        %v587 = vsel %vm444, %v541, 0.0
        %588 = vadd.xlane.f32.xlu0 %v587
        %v589 = vpop.xlane.xlu0 %588
        %v590 = vmul.f32 %v544, %v493
        %v591 = vmul.f32 %v547, %v493
        %v592 = vmul.f32 %v550, %v493
        %v593 = vmul.f32 %v553, %v493
        %v594 = vmul.f32 %v556, %v493
        %v595 = vmul.f32 %v559, %v493
        %v596 = vmul.f32 %v562, %v493
        %v597 = vmul.f32 %v565, %v493
        %v598 = vmul.f32 %v568, %v493
        %v599 = vmul.f32 %v571, %v493
        %v600 = vmul.f32 %v574, %v493
        %v601 = vmul.f32 %v577, %v493
        %v602 = vmul.f32 %v580, %v493
        %v603 = vmul.f32 %v583, %v493
        %v604 = vmul.f32 %v586, %v493
        %v605 = vmul.f32 %v589, %v493
        %v606 = vadd.f32 %v590, 1e-06
        %v607 = vadd.f32 %v591, 1e-06
        %v608 = vadd.f32 %v592, 1e-06
        %v609 = vadd.f32 %v593, 1e-06
        %v610 = vadd.f32 %v594, 1e-06
        %v611 = vadd.f32 %v595, 1e-06
        %v612 = vadd.f32 %v596, 1e-06
        %v613 = vadd.f32 %v597, 1e-06
        %v614 = vadd.f32 %v598, 1e-06
        %v615 = vadd.f32 %v599, 1e-06
        %v616 = vadd.f32 %v600, 1e-06
        %v617 = vadd.f32 %v601, 1e-06
        %v618 = vadd.f32 %v602, 1e-06
        %v619 = vadd.f32 %v603, 1e-06
        %v620 = vadd.f32 %v604, 1e-06
        %v621 = vadd.f32 %v605, 1e-06
        %v622 = vrsqrt.pop %v606
        %v623 = vrsqrt.pop %v607
        %v624 = vrsqrt.pop %v608
        %v625 = vrsqrt.pop %v609
        %v626 = vrsqrt.pop %v610
        %v627 = vrsqrt.pop %v611
        %v628 = vrsqrt.pop %v612
        %v629 = vrsqrt.pop %v613
        %v630 = vrsqrt.pop %v614
        %v631 = vrsqrt.pop %v615
        %v632 = vrsqrt.pop %v616
        %v633 = vrsqrt.pop %v617
        %v634 = vrsqrt.pop %v618
        %v635 = vrsqrt.pop %v619
        %v636 = vrsqrt.pop %v620
        %v637 = vrsqrt.pop %v621
        %v638 = vmul.f32 %v510, %v622
        %v639 = vmul.f32 %v511, %v623
        %v640 = vmul.f32 %v512, %v624
        %v641 = vmul.f32 %v513, %v625
        %v642 = vmul.f32 %v514, %v626
        %v643 = vmul.f32 %v515, %v627
        %v644 = vmul.f32 %v516, %v628
        %v645 = vmul.f32 %v517, %v629
        %v646 = vmul.f32 %v518, %v630
        %v647 = vmul.f32 %v519, %v631
        %v648 = vmul.f32 %v520, %v632
        %v649 = vmul.f32 %v521, %v633
        %v650 = vmul.f32 %v522, %v634
        %v651 = vmul.f32 %v523, %v635
        %v652 = vmul.f32 %v524, %v636
        %v653 = vmul.f32 %v525, %v637
        %v654 = vld [vmem:[%s2] sm:$0x1]
        %v656 = vlaneseq
        %v657 = vshrl.u32 %v656, 7
        %v658 = vsub.s32 0, %v657
        %v659 = vrot.slane %v654, %v658
        %v661 = vmul.f32 %v638, %v659
        %v662 = vmul.f32 %v639, %v659
        %v663 = vmul.f32 %v640, %v659
        %v664 = vmul.f32 %v641, %v659
        %v665 = vmul.f32 %v642, %v659
        %v666 = vmul.f32 %v643, %v659
        %v667 = vmul.f32 %v644, %v659
        %v668 = vmul.f32 %v645, %v659
        %v669 = vmul.f32 %v646, %v659
        %v670 = vmul.f32 %v647, %v659
        %v671 = vmul.f32 %v648, %v659
        %v672 = vmul.f32 %v649, %v659
        %v673 = vmul.f32 %v650, %v659
        %v674 = vmul.f32 %v651, %v659
        %v675 = vmul.f32 %v652, %v659
        %v676 = vmul.f32 %v653, %v659
        %v677 = vld [vmem:[%s3] sm:$0x1]
        %v679 = vlaneseq
        %v680 = vshrl.u32 %v679, 7
        %v681 = vsub.s32 0, %v680
        %v682 = vrot.slane %v677, %v681
        %v684 = vadd.f32 %v661, %v682
        %v685 = vadd.f32 %v662, %v682
        %v686 = vadd.f32 %v663, %v682
        %v687 = vadd.f32 %v664, %v682
        %v688 = vadd.f32 %v665, %v682
        %v689 = vadd.f32 %v666, %v682
        %v690 = vadd.f32 %v667, %v682
        %v691 = vadd.f32 %v668, %v682
        %v692 = vadd.f32 %v669, %v682
        %v693 = vadd.f32 %v670, %v682
        %v694 = vadd.f32 %v671, %v682
        %v695 = vadd.f32 %v672, %v682
        %v696 = vadd.f32 %v673, %v682
        %v697 = vadd.f32 %v674, %v682
        %v698 = vadd.f32 %v675, %v682
        %v699 = vadd.f32 %v676, %v682
        %v700 = vpack.c.bf16 %v685, %v684
        %v701 = vpack.c.bf16 %v687, %v686
        %v702 = vpack.c.bf16 %v689, %v688
        %v703 = vpack.c.bf16 %v691, %v690
        %v704 = vpack.c.bf16 %v693, %v692
        %v705 = vpack.c.bf16 %v695, %v694
        %v706 = vpack.c.bf16 %v697, %v696
        %v707 = vpack.c.bf16 %v699, %v698
        %v708 = vld [vmem:[%s4] sm:$0xf]
        %v709 = vld [vmem:[%s4 + $0x4] sm:$0xf]
        %v710 = vld [vmem:[%s4 + $0x8] sm:$0xf]
        %v711 = vld [vmem:[%s4 + $0xc] sm:$0xf]
        %v712 = vld [vmem:[%s5] sm:$0x1]
        %v714 = vlaneseq
        %v715 = vshrl.u32 %v714, 7
        %v716 = vsub.s32 0, %v715
        %v717 = vrot.slane %v712, %v716
        %v723 = vunpack.c.l.b16 %v708
        %v724 = vunpack.c.l.b16 %v709
        %v725 = vunpack.c.l.b16 %v710
        %v726 = vunpack.c.l.b16 %v711
        %v727 = vpack.c.b16 %v724, %v723
        %v728 = vpack.c.b16 %v726, %v725
        %v732 = vsel %vm444, %v700, 0
        %v735 = vsel %vm444, %v701, 0
        %v738 = vsel %vm444, %v702, 0
        %v741 = vsel %vm444, %v703, 0
        %v744 = vsel %vm444, %v704, 0
        %v747 = vsel %vm444, %v705, 0
        %v750 = vsel %vm444, %v706, 0
        %v753 = vsel %vm444, %v707, 0
        %755 = vmatprep.subr.bf16.mxu0 0
        %756 = vmatpush1.bf16.msra.mxu0 0
        %757 = vmatprep.subr.bf16.mxu0 0
        %758 = vmatpush1.bf16.msra.mxu0 0
        %759 = vmatprep.subr.bf16.mxu0 0
        %760 = vmatpush1.bf16.msra.mxu0 0
        %761 = vmatprep.subr.bf16.mxu0 0
        %762 = vmatpush1.bf16.msra.mxu0 0
        %763 = vmatprep.subr.bf16.mxu0 0
        %764 = vmatpush1.bf16.msra.mxu0 0
        %765 = vmatprep.subr.bf16.mxu0 0
        %766 = vmatpush1.bf16.msra.mxu0 0
        %767 = vmatprep.subr.bf16.mxu0 0
        %768 = vmatpush1.bf16.msra.mxu0 %v728
        %769 = vmatprep.subr.bf16.mxu0 0
        %770 = vmatpush1.bf16.msra.mxu0 %v727
        %771 = vmatprep.subr.bf16.mxu0 0
        %772 = vmatpush2.bf16.msra.mxu0 0
        %773 = vmatprep.subr.bf16.mxu0 0
        %774 = vmatpush2.bf16.msra.mxu0 0
        %775 = vmatprep.subr.bf16.mxu0 0
        %776 = vmatpush2.bf16.msra.mxu0 0
        %777 = vmatprep.subr.bf16.mxu0 0
        %778 = vmatpush2.bf16.msra.mxu0 0
        %779 = vmatprep.subr.bf16.mxu0 0
        %780 = vmatpush2.bf16.msra.mxu0 0
        %781 = vmatprep.subr.bf16.mxu0 0
        %782 = vmatpush2.bf16.msra.mxu0 0
        %783 = vmatprep.subr.bf16.mxu0 0
        %784 = vmatpush2.bf16.msra.mxu0 0
        %785 = vmatprep.subr.bf16.mxu0 0
        %786 = vmatpush2.bf16.msra.mxu0 0
        %787 = vmatprep.mubr.bf16.mxu0 0
        %788 = vmatmul.mubr.bf16.gmra.mxu0 %v732
        %v789 = vpop.f32.mrf.mxu0
        %v790 = vadd.f32 %v717, %v789
        %v791 = vpop.f32.mrf.mxu0
        %v792 = vpop.f32.mrf.mxu0
        %v793 = vadd.f32 %v717, %v792
        %v794 = vpop.f32.mrf.mxu0
        %795 = vmatprep.mubr.bf16.mxu0 0
        %796 = vmatmul.mubr.bf16.gmra.mxu0 %v735
        %v797 = vpop.f32.mrf.mxu0
        %v798 = vadd.f32 %v717, %v797
        %v799 = vpop.f32.mrf.mxu0
        %v800 = vpop.f32.mrf.mxu0
        %v801 = vadd.f32 %v717, %v800
        %v802 = vpop.f32.mrf.mxu0
        %803 = vmatprep.mubr.bf16.mxu0 0
        %804 = vmatmul.mubr.bf16.gmra.mxu0 %v738
        %v805 = vpop.f32.mrf.mxu0
        %v806 = vadd.f32 %v717, %v805
        %v807 = vpop.f32.mrf.mxu0
        %v808 = vpop.f32.mrf.mxu0
        %v809 = vadd.f32 %v717, %v808
        %v810 = vpop.f32.mrf.mxu0
        %811 = vmatprep.mubr.bf16.mxu0 0
        %812 = vmatmul.mubr.bf16.gmra.mxu0 %v741
        %v813 = vpop.f32.mrf.mxu0
        %v814 = vadd.f32 %v717, %v813
        %v815 = vpop.f32.mrf.mxu0
        %v816 = vpop.f32.mrf.mxu0
        %v817 = vadd.f32 %v717, %v816
        %v818 = vpop.f32.mrf.mxu0
        %819 = vmatprep.mubr.bf16.mxu0 0
        %820 = vmatmul.mubr.bf16.gmra.mxu0 %v744
        %v821 = vpop.f32.mrf.mxu0
        %v822 = vadd.f32 %v717, %v821
        %v823 = vpop.f32.mrf.mxu0
        %v824 = vpop.f32.mrf.mxu0
        %v825 = vadd.f32 %v717, %v824
        %v826 = vpop.f32.mrf.mxu0
        %827 = vmatprep.mubr.bf16.mxu0 0
        %828 = vmatmul.mubr.bf16.gmra.mxu0 %v747
        %v829 = vpop.f32.mrf.mxu0
        %v830 = vadd.f32 %v717, %v829
        %v831 = vpop.f32.mrf.mxu0
        %v832 = vpop.f32.mrf.mxu0
        %v833 = vadd.f32 %v717, %v832
        %v834 = vpop.f32.mrf.mxu0
        %835 = vmatprep.mubr.bf16.mxu0 0
        %836 = vmatmul.mubr.bf16.gmra.mxu0 %v750
        %v837 = vpop.f32.mrf.mxu0
        %v838 = vadd.f32 %v717, %v837
        %v839 = vpop.f32.mrf.mxu0
        %v840 = vpop.f32.mrf.mxu0
        %v841 = vadd.f32 %v717, %v840
        %v842 = vpop.f32.mrf.mxu0
        %843 = vmatprep.mubr.bf16.mxu0 0
        %844 = vmatmul.mubr.bf16.gmra.mxu0 %v753
        %v845 = vpop.f32.mrf.mxu0
        %v846 = vadd.f32 %v717, %v845
        %v847 = vpop.f32.mrf.mxu0
        %v848 = vpop.f32.mrf.mxu0
        %v849 = vadd.f32 %v717, %v848
        %v850 = vpop.f32.mrf.mxu0
        %851 = vdwg.mxu0
        %v852 = vmax.f32 %v790, 0.0
        %v853 = vmax.f32 %v793, 0.0
        %v854 = vmax.f32 %v798, 0.0
        %v855 = vmax.f32 %v801, 0.0
        %v856 = vmax.f32 %v806, 0.0
        %v857 = vmax.f32 %v809, 0.0
        %v858 = vmax.f32 %v814, 0.0
        %v859 = vmax.f32 %v817, 0.0
        %v860 = vmax.f32 %v822, 0.0
        %v861 = vmax.f32 %v825, 0.0
        %v862 = vmax.f32 %v830, 0.0
        %v863 = vmax.f32 %v833, 0.0
        %v864 = vmax.f32 %v838, 0.0
        %v865 = vmax.f32 %v841, 0.0
        %v866 = vmax.f32 %v846, 0.0
        %v867 = vmax.f32 %v849, 0.0
        %v868 = vpack.c.bf16 %v853, %v852
        %v869 = vpack.c.bf16 %v855, %v854
        %v870 = vpack.c.bf16 %v857, %v856
        %v871 = vpack.c.bf16 %v859, %v858
        %v872 = vpack.c.bf16 %v861, %v860
        %v873 = vpack.c.bf16 %v863, %v862
        %v874 = vpack.c.bf16 %v865, %v864
        %v875 = vpack.c.bf16 %v867, %v866
        %v876 = vld [vmem:[%s6] sm:$0xf]
        %v877 = vld [vmem:[%s6 + $0x4] sm:$0xf]
        %v878 = vld [vmem:[%s7] sm:$0x1]
        %v880 = vlaneseq
        %v881 = vshrl.u32 %v880, 7
        %v882 = vsub.s32 0, %v881
        %v883 = vrot.slane %v878, %v882
        %v887 = vunpack.c.l.b16 %v876
        %v888 = vunpack.c.l.b16 %v877
        %v889 = vpack.c.b16 %v888, %v887
        %vm891 = vcmask 130048
        %v893 = vsel %vm891, %v868, 0
        %v896 = vsel %vm891, %v869, 0
        %v899 = vsel %vm891, %v870, 0
        %v902 = vsel %vm891, %v871, 0
        %v905 = vsel %vm891, %v872, 0
        %v908 = vsel %vm891, %v873, 0
        %v911 = vsel %vm891, %v874, 0
        %v914 = vsel %vm891, %v875, 0
        %916 = vmatprep.subr.bf16.mxu0 0
        %917 = vmatpush1.bf16.msra.mxu0 0
        %918 = vmatprep.subr.bf16.mxu0 0
        %919 = vmatpush1.bf16.msra.mxu0 0
        %920 = vmatprep.subr.bf16.mxu0 0
        %921 = vmatpush1.bf16.msra.mxu0 0
        %922 = vmatprep.subr.bf16.mxu0 0
        %923 = vmatpush1.bf16.msra.mxu0 0
        %924 = vmatprep.subr.bf16.mxu0 0
        %925 = vmatpush1.bf16.msra.mxu0 0
        %926 = vmatprep.subr.bf16.mxu0 0
        %927 = vmatpush1.bf16.msra.mxu0 0
        %928 = vmatprep.subr.bf16.mxu0 0
        %929 = vmatpush1.bf16.msra.mxu0 0
        %930 = vmatprep.subr.bf16.mxu0 0
        %931 = vmatpush1.bf16.msra.mxu0 %v889
        %932 = vmatprep.subr.bf16.mxu0 0
        %933 = vmatpush2.bf16.msra.mxu0 0
        %934 = vmatprep.subr.bf16.mxu0 0
        %935 = vmatpush2.bf16.msra.mxu0 0
        %936 = vmatprep.subr.bf16.mxu0 0
        %937 = vmatpush2.bf16.msra.mxu0 0
        %938 = vmatprep.subr.bf16.mxu0 0
        %939 = vmatpush2.bf16.msra.mxu0 0
        %940 = vmatprep.subr.bf16.mxu0 0
        %941 = vmatpush2.bf16.msra.mxu0 0
        %942 = vmatprep.subr.bf16.mxu0 0
        %943 = vmatpush2.bf16.msra.mxu0 0
        %944 = vmatprep.subr.bf16.mxu0 0
        %945 = vmatpush2.bf16.msra.mxu0 0
        %946 = vmatprep.subr.bf16.mxu0 0
        %947 = vmatpush2.bf16.msra.mxu0 0
        %948 = vmatprep.mubr.bf16.mxu0 0
        %949 = vmatmul.mubr.bf16.gmra.mxu0 %v893
        %v950 = vpop.f32.mrf.mxu0
        %v951 = vadd.f32 %v883, %v950
        %v952 = vpop.f32.mrf.mxu0
        %v953 = vpop.f32.mrf.mxu0
        %v954 = vadd.f32 %v883, %v953
        %v955 = vpop.f32.mrf.mxu0
        %956 = vmatprep.mubr.bf16.mxu0 0
        %957 = vmatmul.mubr.bf16.gmra.mxu0 %v896
        %v958 = vpop.f32.mrf.mxu0
        %v959 = vadd.f32 %v883, %v958
        %v960 = vpop.f32.mrf.mxu0
        %v961 = vpop.f32.mrf.mxu0
        %v962 = vadd.f32 %v883, %v961
        %v963 = vpop.f32.mrf.mxu0
        %964 = vmatprep.mubr.bf16.mxu0 0
        %965 = vmatmul.mubr.bf16.gmra.mxu0 %v899
        %v966 = vpop.f32.mrf.mxu0
        %v967 = vadd.f32 %v883, %v966
        %v968 = vpop.f32.mrf.mxu0
        %v969 = vpop.f32.mrf.mxu0
        %v970 = vadd.f32 %v883, %v969
        %v971 = vpop.f32.mrf.mxu0
        %972 = vmatprep.mubr.bf16.mxu0 0
        %973 = vmatmul.mubr.bf16.gmra.mxu0 %v902
        %v974 = vpop.f32.mrf.mxu0
        %v975 = vadd.f32 %v883, %v974
        %v976 = vpop.f32.mrf.mxu0
        %v977 = vpop.f32.mrf.mxu0
        %v978 = vadd.f32 %v883, %v977
        %v979 = vpop.f32.mrf.mxu0
        %980 = vmatprep.mubr.bf16.mxu0 0
        %981 = vmatmul.mubr.bf16.gmra.mxu0 %v905
        %v982 = vpop.f32.mrf.mxu0
        %v983 = vadd.f32 %v883, %v982
        %v984 = vpop.f32.mrf.mxu0
        %v985 = vpop.f32.mrf.mxu0
        %v986 = vadd.f32 %v883, %v985
        %v987 = vpop.f32.mrf.mxu0
        %988 = vmatprep.mubr.bf16.mxu0 0
        %989 = vmatmul.mubr.bf16.gmra.mxu0 %v908
        %v990 = vpop.f32.mrf.mxu0
        %v991 = vadd.f32 %v883, %v990
        %v992 = vpop.f32.mrf.mxu0
        %v993 = vpop.f32.mrf.mxu0
        %v994 = vadd.f32 %v883, %v993
        %v995 = vpop.f32.mrf.mxu0
        %996 = vmatprep.mubr.bf16.mxu0 0
        %997 = vmatmul.mubr.bf16.gmra.mxu0 %v911
        %v998 = vpop.f32.mrf.mxu0
        %v999 = vadd.f32 %v883, %v998
        %v1000 = vpop.f32.mrf.mxu0
        %v1001 = vpop.f32.mrf.mxu0
        %v1002 = vadd.f32 %v883, %v1001
        %v1003 = vpop.f32.mrf.mxu0
        %1004 = vmatprep.mubr.bf16.mxu0 0
        %1005 = vmatmul.mubr.bf16.gmra.mxu0 %v914
        %v1006 = vpop.f32.mrf.mxu0
        %v1007 = vadd.f32 %v883, %v1006
        %v1008 = vpop.f32.mrf.mxu0
        %v1009 = vpop.f32.mrf.mxu0
        %v1010 = vadd.f32 %v883, %v1009
        %v1011 = vpop.f32.mrf.mxu0
        %1012 = vdwg.mxu0
        %v1013 = vmax.f32 %v951, 0.0
        %v1014 = vmax.f32 %v954, 0.0
        %v1015 = vmax.f32 %v959, 0.0
        %v1016 = vmax.f32 %v962, 0.0
        %v1017 = vmax.f32 %v967, 0.0
        %v1018 = vmax.f32 %v970, 0.0
        %v1019 = vmax.f32 %v975, 0.0
        %v1020 = vmax.f32 %v978, 0.0
        %v1021 = vmax.f32 %v983, 0.0
        %v1022 = vmax.f32 %v986, 0.0
        %v1023 = vmax.f32 %v991, 0.0
        %v1024 = vmax.f32 %v994, 0.0
        %v1025 = vmax.f32 %v999, 0.0
        %v1026 = vmax.f32 %v1002, 0.0
        %v1027 = vmax.f32 %v1007, 0.0
        %v1028 = vmax.f32 %v1010, 0.0
        %v1029 = vld [vmem:[%s8] sm:$0xff]
        %v1030 = vld [vmem:[%s8 + $0x8] sm:$0xff]
        %v1031 = vld [vmem:[%s9] sm:$0x1]
        %v1033 = vlaneseq
        %v1034 = vshrl.u32 %v1033, 7
        %v1035 = vsub.s32 0, %v1034
        %v1036 = vrot.slane %v1031, %v1035
        %v1039 = vsel %vm891, %v1013, 0
        %v1042 = vsel %vm891, %v1014, 0
        %v1045 = vsel %vm891, %v1015, 0
        %v1048 = vsel %vm891, %v1016, 0
        %v1051 = vsel %vm891, %v1017, 0
        %v1054 = vsel %vm891, %v1018, 0
        %v1057 = vsel %vm891, %v1019, 0
        %v1060 = vsel %vm891, %v1020, 0
        %v1063 = vsel %vm891, %v1021, 0
        %v1066 = vsel %vm891, %v1022, 0
        %v1069 = vsel %vm891, %v1023, 0
        %v1072 = vsel %vm891, %v1024, 0
        %v1075 = vsel %vm891, %v1025, 0
        %v1078 = vsel %vm891, %v1026, 0
        %v1081 = vsel %vm891, %v1027, 0
        %v1084 = vsel %vm891, %v1028, 0
        %1086 = vmatprep.subr.mxu0 0.0
        %1087 = vmatpush1.msra.mxu0 0.0
        %1088 = vmatprep.subr.mxu0 0.0
        %1089 = vmatpush1.msra.mxu0 0.0
        %1090 = vmatprep.subr.mxu0 0.0
        %1091 = vmatpush1.msra.mxu0 0.0
        %1092 = vmatprep.subr.mxu0 0.0
        %1093 = vmatpush1.msra.mxu0 0.0
        %1094 = vmatprep.subr.mxu0 0.0
        %1095 = vmatpush1.msra.mxu0 0.0
        %1096 = vmatprep.subr.mxu0 0.0
        %1097 = vmatpush1.msra.mxu0 0.0
        %1098 = vmatprep.subr.mxu0 0.0
        %1099 = vmatpush1.msra.mxu0 0.0
        %1100 = vmatprep.subr.mxu0 0.0
        %1101 = vmatpush1.msra.mxu0 0.0
        %1102 = vmatprep.subr.mxu0 0.0
        %1103 = vmatpush1.msra.mxu0 0.0
        %1104 = vmatprep.subr.mxu0 0.0
        %1105 = vmatpush1.msra.mxu0 0.0
        %1106 = vmatprep.subr.mxu0 0.0
        %1107 = vmatpush1.msra.mxu0 0.0
        %1108 = vmatprep.subr.mxu0 0.0
        %1109 = vmatpush1.msra.mxu0 0.0
        %1110 = vmatprep.subr.mxu0 0.0
        %1111 = vmatpush1.msra.mxu0 0.0
        %1112 = vmatprep.subr.mxu0 0.0
        %1113 = vmatpush1.msra.mxu0 0.0
        %1114 = vmatprep.subr.mxu0 0.0
        %1115 = vmatpush1.msra.mxu0 %v1030
        %1116 = vmatprep.subr.mxu0 0.0
        %1117 = vmatpush1.msra.mxu0 %v1029
        %1118 = vmatprep.subr.mxu0 0.0
        %1119 = vmatpush2.msra.mxu0 0.0
        %1120 = vmatprep.subr.mxu0 0.0
        %1121 = vmatpush2.msra.mxu0 0.0
        %1122 = vmatprep.subr.mxu0 0.0
        %1123 = vmatpush2.msra.mxu0 0.0
        %1124 = vmatprep.subr.mxu0 0.0
        %1125 = vmatpush2.msra.mxu0 0.0
        %1126 = vmatprep.subr.mxu0 0.0
        %1127 = vmatpush2.msra.mxu0 0.0
        %1128 = vmatprep.subr.mxu0 0.0
        %1129 = vmatpush2.msra.mxu0 0.0
        %1130 = vmatprep.subr.mxu0 0.0
        %1131 = vmatpush2.msra.mxu0 0.0
        %1132 = vmatprep.subr.mxu0 0.0
        %1133 = vmatpush2.msra.mxu0 0.0
        %1134 = vmatprep.subr.mxu0 0.0
        %1135 = vmatpush2.msra.mxu0 0.0
        %1136 = vmatprep.subr.mxu0 0.0
        %1137 = vmatpush2.msra.mxu0 0.0
        %1138 = vmatprep.subr.mxu0 0.0
        %1139 = vmatpush2.msra.mxu0 0.0
        %1140 = vmatprep.subr.mxu0 0.0
        %1141 = vmatpush2.msra.mxu0 0.0
        %1142 = vmatprep.subr.mxu0 0.0
        %1143 = vmatpush2.msra.mxu0 0.0
        %1144 = vmatprep.subr.mxu0 0.0
        %1145 = vmatpush2.msra.mxu0 0.0
        %1146 = vmatprep.subr.mxu0 0.0
        %1147 = vmatpush2.msra.mxu0 0.0
        %1148 = vmatprep.subr.mxu0 0.0
        %1149 = vmatpush2.msra.mxu0 0.0
        %1150 = vmatprep.mubr.f32.mxu0 0.0
        %1151 = vmatmul.mubr.f32.gmra.mxu0 %v1039
        %v1152 = vpop.f32.mrf.mxu0
        %v1153 = vadd.f32 %v1036, %v1152
        %v1154 = vpop.f32.mrf.mxu0
        %1155 = vmatprep.mubr.f32.mxu0 0.0
        %1156 = vmatmul.mubr.f32.gmra.mxu0 %v1042
        %v1157 = vpop.f32.mrf.mxu0
        %v1158 = vadd.f32 %v1036, %v1157
        %v1159 = vpop.f32.mrf.mxu0
        %1160 = vmatprep.mubr.f32.mxu0 0.0
        %1161 = vmatmul.mubr.f32.gmra.mxu0 %v1045
        %v1162 = vpop.f32.mrf.mxu0
        %v1163 = vadd.f32 %v1036, %v1162
        %v1164 = vpop.f32.mrf.mxu0
        %1165 = vmatprep.mubr.f32.mxu0 0.0
        %1166 = vmatmul.mubr.f32.gmra.mxu0 %v1048
        %v1167 = vpop.f32.mrf.mxu0
        %v1168 = vadd.f32 %v1036, %v1167
        %v1169 = vpop.f32.mrf.mxu0
        %1170 = vmatprep.mubr.f32.mxu0 0.0
        %1171 = vmatmul.mubr.f32.gmra.mxu0 %v1051
        %v1172 = vpop.f32.mrf.mxu0
        %v1173 = vadd.f32 %v1036, %v1172
        %v1174 = vpop.f32.mrf.mxu0
        %1175 = vmatprep.mubr.f32.mxu0 0.0
        %1176 = vmatmul.mubr.f32.gmra.mxu0 %v1054
        %v1177 = vpop.f32.mrf.mxu0
        %v1178 = vadd.f32 %v1036, %v1177
        %v1179 = vpop.f32.mrf.mxu0
        %1180 = vmatprep.mubr.f32.mxu0 0.0
        %1181 = vmatmul.mubr.f32.gmra.mxu0 %v1057
        %v1182 = vpop.f32.mrf.mxu0
        %v1183 = vadd.f32 %v1036, %v1182
        %v1184 = vpop.f32.mrf.mxu0
        %1185 = vmatprep.mubr.f32.mxu0 0.0
        %1186 = vmatmul.mubr.f32.gmra.mxu0 %v1060
        %v1187 = vpop.f32.mrf.mxu0
        %v1188 = vadd.f32 %v1036, %v1187
        %v1189 = vpop.f32.mrf.mxu0
        %1190 = vmatprep.mubr.f32.mxu0 0.0
        %1191 = vmatmul.mubr.f32.gmra.mxu0 %v1063
        %v1192 = vpop.f32.mrf.mxu0
        %v1193 = vadd.f32 %v1036, %v1192
        %v1194 = vpop.f32.mrf.mxu0
        %1195 = vmatprep.mubr.f32.mxu0 0.0
        %1196 = vmatmul.mubr.f32.gmra.mxu0 %v1066
        %v1197 = vpop.f32.mrf.mxu0
        %v1198 = vadd.f32 %v1036, %v1197
        %v1199 = vpop.f32.mrf.mxu0
        %1200 = vmatprep.mubr.f32.mxu0 0.0
        %1201 = vmatmul.mubr.f32.gmra.mxu0 %v1069
        %v1202 = vpop.f32.mrf.mxu0
        %v1203 = vadd.f32 %v1036, %v1202
        %v1204 = vpop.f32.mrf.mxu0
        %1205 = vmatprep.mubr.f32.mxu0 0.0
        %1206 = vmatmul.mubr.f32.gmra.mxu0 %v1072
        %v1207 = vpop.f32.mrf.mxu0
        %v1208 = vadd.f32 %v1036, %v1207
        %v1209 = vpop.f32.mrf.mxu0
        %1210 = vmatprep.mubr.f32.mxu0 0.0
        %1211 = vmatmul.mubr.f32.gmra.mxu0 %v1075
        %v1212 = vpop.f32.mrf.mxu0
        %v1213 = vadd.f32 %v1036, %v1212
        %v1214 = vpop.f32.mrf.mxu0
        %1215 = vmatprep.mubr.f32.mxu0 0.0
        %1216 = vmatmul.mubr.f32.gmra.mxu0 %v1078
        %v1217 = vpop.f32.mrf.mxu0
        %v1218 = vadd.f32 %v1036, %v1217
        %v1219 = vpop.f32.mrf.mxu0
        %1220 = vmatprep.mubr.f32.mxu0 0.0
        %1221 = vmatmul.mubr.f32.gmra.mxu0 %v1081
        %v1222 = vpop.f32.mrf.mxu0
        %v1223 = vadd.f32 %v1036, %v1222
        %v1224 = vpop.f32.mrf.mxu0
        %1225 = vmatprep.mubr.f32.mxu0 0.0
        %1226 = vmatmul.mubr.f32.gmra.mxu0 %v1084
        %v1227 = vpop.f32.mrf.mxu0
        %v1228 = vadd.f32 %v1036, %v1227
        %v1229 = vpop.f32.mrf.mxu0
        %1230 = vdwg.mxu0
        %1231 = vxpose.xlu0.b32.start [1/16] %v1153, 128
        %1232 = vxpose.xlu0.b32.cont [2/16] %v1158, 128
        %1233 = vxpose.xlu0.b32.cont [3/16] %v1163, 128
        %1234 = vxpose.xlu0.b32.cont [4/16] %v1168, 128
        %1235 = vxpose.xlu0.b32.cont [5/16] %v1173, 128
        %1236 = vxpose.xlu0.b32.cont [6/16] %v1178, 128
        %1237 = vxpose.xlu0.b32.cont [7/16] %v1183, 128
        %1238 = vxpose.xlu0.b32.cont [8/16] %v1188, 128
        %1239 = vxpose.xlu0.b32.cont [9/16] %v1193, 128
        %1240 = vxpose.xlu0.b32.cont [10/16] %v1198, 128
        %1241 = vxpose.xlu0.b32.cont [11/16] %v1203, 128
        %1242 = vxpose.xlu0.b32.cont [12/16] %v1208, 128
        %1243 = vxpose.xlu0.b32.cont [13/16] %v1213, 128
        %1244 = vxpose.xlu0.b32.cont [14/16] %v1218, 128
        %1245 = vxpose.xlu0.b32.cont [15/16] %v1223, 128
        %1246 = vxpose.xlu0.b32.end [16/16] %v1228, 128
        %v1247 = vpop.trf.xlu0
        %v1248 = vpop.trf.xlu0
        %v1249 = vpop.trf.xlu0
        %v1250 = vpop.trf.xlu0
        %v1251 = vpop.trf.xlu0
        %v1252 = vpop.trf.xlu0
        %v1253 = vpop.trf.xlu0
        %v1254 = vpop.trf.xlu0
        %v1255 = vpop.trf.xlu0
        %v1256 = vpop.trf.xlu0
        %v1257 = vpop.trf.xlu0
        %v1258 = vpop.trf.xlu0
        %v1259 = vpop.trf.xlu0
        %v1260 = vpop.trf.xlu0
        %v1261 = vpop.trf.xlu0
        %v1262 = vpop.trf.xlu0
        %1263 = vst [vmem:[%s378] sm:$0xff] %v1247
        %s1264 = sand.u32 %s266, 1
        %s1265 = scalar_lea.sflag [#allocation3], %s1264
        %s1266 = sand.u32 %s266, 1
        %s1267 = smul.addr %s1266, 8
        %s1268 = scalar_lea.vmem [#allocation2], %s1267
        // Predicated region
        $region61: #{tpu_custom_call.1} parent=59 // pred_check
          %p1269 = pneg %p276
        $region62: #{tpu_custom_call.1} parent=59 // pred_check_branch
          %1271 = sbr.rel (%p1269) target = $region64
        $region63: #{tpu_custom_call.1} parent=59 // pred_region
          %s1273 = ssub.s32 128, 128
          %1274 = vsyncadd %s1265, %s1273
          %s1275 = sadd.s32 %s28, %s29
          %s1276 = smul.addr %s1275, 128
          %s1277 = scalar_lea.hbm %s10, %s1276
          %s1279 = sshll.u32 %s1268, 4
          %s1280 = int_to_ptr.vmem [resolvable:$true] %s1279
          %1282 = dma.vmem_to_hbm [thread:$0]  %s1280, 128, %s1277, %s1265
        $region64: #{tpu_custom_call.1} parent=59 // pred_fallthru
          _
      $region60: #{tpu_custom_call.1} parent=5 // pred_fallthru
        _
      %p1283 = scmp.le.s32.totalorder 2, %s19
      // Predicated region
      $region65: #{tpu_custom_call.1} parent=5 // pred_check
        %p1284 = pneg %p1283
      $region66: #{tpu_custom_call.1} parent=5 // pred_check_branch
        %1286 = sbr.rel (%p1284) target = $region68
      $region67: #{tpu_custom_call.1} parent=5 // pred_region
        %s1287 = ssub.s32 %s19, 2
        // Predicated region
        $region69: #{tpu_custom_call.1} parent=67 // pred_check
          %p1288 = pneg %p282
        $region70: #{tpu_custom_call.1} parent=67 // pred_check_branch
          %1290 = sbr.rel (%p1288) target = $region72
        $region71: #{tpu_custom_call.1} parent=67 // pred_region
          %s1291 = sand.u32 %s267, 1
          %s1292 = scalar_lea.sflag [#allocation3], %s1291
          %s1293 = sand.u32 %s267, 1
          %s1294 = smul.addr %s1293, 8
          %s1295 = scalar_lea.vmem [#allocation2], %s1294
          %1296 = dma.done %s1292, 128
        $region72: #{tpu_custom_call.1} parent=67 // pred_fallthru
          _
      $region68: #{tpu_custom_call.1} parent=5 // pred_fallthru
        _
    $region6: #{tpu_custom_call.1} parent=1 // loop_footer
      %s23 = sadd.s32 1, %s19
    $region7: #{tpu_custom_call.1} parent=1 // loop_footer_branch
      %18 = sbr.rel target = $region3
    $region8: #{tpu_custom_call.1} parent=1 // loop_exit
      _
    %1297 = vsyncpa [#allocation3], 1
    %s1298 = scalar_lea.sflag [#allocation3], 1
    %1299 = vsyncpa %s1298, 1

</llo_original>
